<compile_context>
chip_gen: v5e
topology: v5e:2x2
jax: 0.10.0
libtpu: 0.0.40
codegen_flags: <defaults>
</compile_context>

<pallas_src>
from collections import namedtuple

import numpy as np
import jax
import jax.numpy as jnp
from jax.experimental import pallas as pl
from jax.experimental.pallas import tpu as pltpu

NR_MIX = 10
OUT_CH = 3
OUT_FEATURES = (OUT_CH * 3 + 1) * NR_MIX   # 100
N_RAND = NR_MIX + OUT_CH                   # 13 noise rows per pixel

_fields = ['likelihood', 'samples', 'mean', 'mode', 'variance', 'distribution',
           'distribution_kwargs']
LikelihoodData = namedtuple('LikelihoodData', _fields, defaults=[None] * len(_fields))


# ----------------------------------------------------------------------------- helpers
def _softplus(z):
    return jnp.maximum(z, 0.0) + jnp.log(1.0 + jnp.exp(-jnp.abs(z)))


def _conv_and_split(xp_ref, w_ref, b_ref, l_ref):
    """1x1 weight-normed conv + slice/stack DMoL params (all shapes (rows, T))."""
    nr = NR_MIX
    L = (jnp.dot(w_ref[...], xp_ref[...], preferred_element_type=jnp.float32)
         + b_ref[...])                                       # (100, T)
    l_ref[...] = L.astype(l_ref.dtype)                       # lane-dense store

    logit = L[:nr]                                           # (10, T)
    # channel c lives at rows nr + 3*nr*c .. nr + 3*nr*(c+1): [means | logsc | coefs]
    means_all = jnp.concatenate([L[nr:2 * nr], L[4 * nr:5 * nr], L[7 * nr:8 * nr]],
                                axis=0)                      # (30, T)
    logsc_all = jnp.maximum(
        jnp.concatenate([L[2 * nr:3 * nr], L[5 * nr:6 * nr], L[8 * nr:9 * nr]], axis=0),
        -7.0)                                                # (30, T)
    coefs_raw = jnp.concatenate([L[3 * nr:4 * nr], L[6 * nr:7 * nr], L[9 * nr:10 * nr]],
                                axis=0)                      # (30, T)
    tc_all = jnp.tanh(coefs_raw)                             # ONE tanh over 30 rows
    return logit, means_all, logsc_all, tc_all


def _rsample(logit, means_all, logsc_all, tc_all, noise):
    """Gumbel-max mixture pick + logistic rsample.  noise rows 0..9 Gumbel, 10..12 logistic."""
    nr = NR_MIX
    g = logit + noise[:nr]                                   # Gumbel-perturbed logits (nr, T)
    gmax = jnp.max(g, axis=0, keepdims=True)
    row = jax.lax.broadcasted_iota(jnp.int32, g.shape, 0).astype(jnp.float32)
    first = jnp.min(jnp.where(g == gmax, row, float(nr)), axis=0, keepdims=True)
    sel = (row == first).astype(jnp.float32)                 # one-hot over mixtures (nr, T)

    def pick(p):                                             # mixture-select -> (1, T)
        return jnp.sum(p * sel, axis=0, keepdims=True)

    pm = jnp.concatenate([pick(means_all[0:nr]), pick(means_all[nr:2 * nr]),
                          pick(means_all[2 * nr:3 * nr])], axis=0)       # (3, T)
    pls = jnp.concatenate([pick(logsc_all[0:nr]), pick(logsc_all[nr:2 * nr]),
                           pick(logsc_all[2 * nr:3 * nr])], axis=0)      # (3, T)
    pc = jnp.concatenate([pick(tc_all[0:nr]), pick(tc_all[nr:2 * nr]),
                          pick(tc_all[2 * nr:3 * nr])], axis=0)          # (3, T) (tanh reused)

    r = pm + jnp.exp(pls) * noise[nr:nr + 3]                 # ONE exp over (3, T)
    y0 = jnp.clip(r[0:1], -1.0, 1.0)
    y1 = jnp.clip(r[1:2] + pc[0:1] * y0, -1.0, 1.0)
    y2 = jnp.clip(r[2:3] + pc[1:2] * y0 + pc[2:3] * y1, -1.0, 1.0)
    smp = jnp.concatenate([y0, y1, y2], axis=0)              # (3, T) in [-1, 1]
    return jnp.clip((smp + 1.0) * 0.5, 0.0, 1.0)


def _loglik_partial(logit, means_all, logsc_all, tc_all, xs):
    """Log-likelihood of this tile's pixels, stacked over channels: one (30, T) pass."""
    nr = NR_MIX
    x0, x1, x2 = xs[0:1], xs[1:2], xs[2:3]
    tc0 = tc_all[0:nr]
    tc1 = tc_all[nr:2 * nr]
    tc2 = tc_all[2 * nr:3 * nr]

    mean_stack = jnp.concatenate([
        means_all[0:nr],
        means_all[nr:2 * nr] + tc0 * x0,
        means_all[2 * nr:3 * nr] + tc1 * x0 + tc2 * x1], axis=0)         # (30, T)
    x_stack = jnp.concatenate([
        jnp.broadcast_to(x0, (nr,) + x0.shape[1:]),
        jnp.broadcast_to(x1, (nr,) + x1.shape[1:]),
        jnp.broadcast_to(x2, (nr,) + x2.shape[1:])], axis=0)             # (30, T)

    centered = x_stack - mean_stack
    inv = jnp.exp(-logsc_all)                                # (30, T) — one exp
    plus_in = inv * (centered + 1.0 / 255.0)
    min_in = inv * (centered - 1.0 / 255.0)
    sp_plus = _softplus(plus_in)
    sp_min = _softplus(min_in)
    log_cdf_plus = plus_in - sp_plus
    log_one_minus_cdf_min = -sp_min
    # sigmoid(z) == exp(z - softplus(z)): reuse softplus results (fewer EUP pushes).
    cdf_delta = jnp.exp(log_cdf_plus) - jnp.exp(min_in - sp_min)
    mid_in = inv * centered
    log_pdf_mid = mid_in - logsc_all - 2.0 * _softplus(mid_in)

    iio = jnp.where(cdf_delta > 1e-5,
                    jnp.log(jnp.maximum(cdf_delta, 1e-12)),
                    log_pdf_mid - np.float32(np.log(127.5)))
    io = jnp.where(x_stack > 0.999, log_one_minus_cdf_min, iio)
    lp_stack = jnp.where(x_stack < -0.999, log_cdf_plus, io)            # (30, T)

    lp = lp_stack[0:nr] + lp_stack[nr:2 * nr] + lp_stack[2 * nr:3 * nr]  # (10, T)

    # + log_softmax over mixtures (sublane axis)
    lmax = jnp.max(logit, axis=0, keepdims=True)
    lse_logit = jnp.log(jnp.sum(jnp.exp(logit - lmax), axis=0, keepdims=True)) + lmax
    lp = lp + (logit - lse_logit)

    # logsumexp over mixtures, then sum over this tile's pixels
    pmax = jnp.max(lp, axis=0, keepdims=True)
    lse = jnp.log(jnp.sum(jnp.exp(lp - pmax), axis=0, keepdims=True)) + pmax   # (1, T)
    return jnp.sum(lse)


# ----------------------------------------------------------------------------- kernels
def _fused_dmol_kernel(xp_ref, w_ref, b_ref, xs_ref, n_ref, l_ref, s_ref, lik_ref):
    """One (batch b, HW tile t) grid step: conv + rsample + log-likelihood."""
    t = pl.program_id(1)
    logit, means_all, logsc_all, tc_all = _conv_and_split(xp_ref, w_ref, b_ref, l_ref)
    s_ref[...] = _rsample(logit, means_all, logsc_all, tc_all, n_ref[...])
    partial = _loglik_partial(logit, means_all, logsc_all, tc_all, xs_ref[...])

    @pl.when(t == 0)
    def _():
        lik_ref[...] = jnp.zeros_like(lik_ref)
    lik_ref[...] = lik_ref[...] + partial


def _fused_dmol_sample_kernel(xp_ref, w_ref, b_ref, n_ref, l_ref, s_ref):
    """Sample-only variant (x is None): conv + rsample, no likelihood work."""
    logit, means_all, logsc_all, tc_all = _conv_and_split(xp_ref, w_ref, b_ref, l_ref)
    s_ref[...] = _rsample(logit, means_all, logsc_all, tc_all, n_ref[...])


# ----------------------------------------------------------------------------- wrappers
def _pick_tile(hw, cap=2048):
    """Largest multiple of 128 that divides hw (capped); fall back to a full-row block."""
    if hw % 128 != 0:
        return hw
    best = 128
    d = 256
    while d <= min(hw, cap):
        if hw % d == 0:
            best = d
        d += 128
    return best


def fused_dmol_forward(xp_bcn, w_fc, b_f1, xs_b3n, noise_brn):
    B, cin, HW = xp_bcn.shape
    F = w_fc.shape[0]
    tile_n = _pick_tile(HW)
    grid = (B, HW // tile_n)

    out_shape = (
        jax.ShapeDtypeStruct((B, F, HW), jnp.float32),        # all_params (NCHW, flattened)
        jax.ShapeDtypeStruct((B, OUT_CH, HW), jnp.float32),   # samples    (NCHW, flattened)
        jax.ShapeDtypeStruct((B, 1, 128), jnp.float32),       # per-batch log-likelihood
    )
    in_specs = [
        pl.BlockSpec((None, cin, tile_n), lambda b, t: (b, 0, t)),
        pl.BlockSpec((F, cin), lambda b, t: (0, 0)),
        pl.BlockSpec((F, 1), lambda b, t: (0, 0)),
        pl.BlockSpec((None, OUT_CH, tile_n), lambda b, t: (b, 0, t)),
        pl.BlockSpec((None, N_RAND, tile_n), lambda b, t: (b, 0, t)),
    ]
    out_specs = (
        pl.BlockSpec((None, F, tile_n), lambda b, t: (b, 0, t)),
        pl.BlockSpec((None, OUT_CH, tile_n), lambda b, t: (b, 0, t)),
        pl.BlockSpec((None, 1, 128), lambda b, t: (b, 0, 0)),   # resident over HW tiles
    )
    return pl.pallas_call(
        _fused_dmol_kernel,
        out_shape=out_shape,
        grid=grid,
        in_specs=in_specs,
        out_specs=out_specs,
        compiler_params=pltpu.CompilerParams(
            dimension_semantics=("parallel", "arbitrary")),
    )(xp_bcn, w_fc, b_f1, xs_b3n, noise_brn)


def fused_dmol_sample(xp_bcn, w_fc, b_f1, noise_brn):
    B, cin, HW = xp_bcn.shape
    F = w_fc.shape[0]
    tile_n = _pick_tile(HW)
    grid = (B, HW // tile_n)

    out_shape = (
        jax.ShapeDtypeStruct((B, F, HW), jnp.float32),
        jax.ShapeDtypeStruct((B, OUT_CH, HW), jnp.float32),
    )
    in_specs = [
        pl.BlockSpec((None, cin, tile_n), lambda b, t: (b, 0, t)),
        pl.BlockSpec((F, cin), lambda b, t: (0, 0)),
        pl.BlockSpec((F, 1), lambda b, t: (0, 0)),
        pl.BlockSpec((None, N_RAND, tile_n), lambda b, t: (b, 0, t)),
    ]
    out_specs = (
        pl.BlockSpec((None, F, tile_n), lambda b, t: (b, 0, t)),
        pl.BlockSpec((None, OUT_CH, tile_n), lambda b, t: (b, 0, t)),
    )
    return pl.pallas_call(
        _fused_dmol_sample_kernel,
        out_shape=out_shape,
        grid=grid,
        in_specs=in_specs,
        out_specs=out_specs,
        compiler_params=pltpu.CompilerParams(
            dimension_semantics=("parallel", "parallel")),
    )(xp_bcn, w_fc, b_f1, noise_brn)


# ----------------------------------------------------------------------------- module
class DiscretizedLogisticMixLikelihoodConv2d:
    """Forward-pass equivalent of the PyTorch module (deterministic synthetic params)."""

    def __init__(self, input_shape, out_shape, nr_mix=10, kernel_size=1, key=None):
        if out_shape[0] != 3:
            raise NotImplementedError("Only 3 color channels supported")
        assert nr_mix == NR_MIX
        assert kernel_size == 1  # TODO(synk): kernel_size>1 same-padding weight-normed conv not implemented
        cin = input_shape[0]
        f = (out_shape[0] * 3 + 1) * nr_mix
        k1, k2, k3 = jax.random.split(key, 3)
        # weight-norm parameterization: w = g * v / ||v|| (norm over in/kh/kw per out channel)
        v = jax.random.normal(k1, (f, cin, 1, 1), jnp.float32) * 0.05
        g = 1.0 + 0.1 * jax.random.normal(k2, (f,), jnp.float32)
        bias = 0.01 * jax.random.normal(k3, (f,), jnp.float32)
        vnorm = jnp.sqrt(jnp.sum(v * v, axis=(1, 2, 3), keepdims=True))
        w = g[:, None, None, None] * v / vnorm      # (F, Cin, 1, 1)
        self.w_fc = w[:, :, 0, 0]                   # (F, Cin)
        self.b_f1 = bias[:, None]                   # (F, 1)

    def forward(self, x_p, x=None, seed=0):
        """x_p: (B, Cin, H, W) float32 NCHW.  x: (B, 3, H, W) in [0, 1] or None."""
        B, cin, H, W = x_p.shape
        HW = H * W

        # NCHW flattened is already the "features-on-sublanes / pixels-on-lanes" layout.
        xp_bcn = x_p.reshape(B, cin, HW)

        # Host-side PRNG; pre-transform the noise so the kernel does no log() for the sampler.
        # Rows 0..9: Gumbel = -log(-log(u)); rows 10..12: logistic = log(u) - log(1-u).
        u = jax.random.uniform(jax.random.PRNGKey(seed), (B, N_RAND, HW),
                               jnp.float32, minval=1e-5, maxval=1.0 - 1e-5)
        noise = jnp.concatenate(
            [-jnp.log(-jnp.log(u[:, :NR_MIX])),
             jnp.log(u[:, NR_MIX:]) - jnp.log(1.0 - u[:, NR_MIX:])], axis=1)

        if x is None:
            # Sample-only kernel: skips the whole log-likelihood block (~2/3 of the work).
            l_flat, s_flat = fused_dmol_sample(xp_bcn, self.w_fc, self.b_f1, noise)
            likelihood = None
        else:
            xs_b3n = x.reshape(B, OUT_CH, HW) * 2.0 - 1.0      # rescale to [-1, 1]
            l_flat, s_flat, lik_blk = fused_dmol_forward(xp_bcn, self.w_fc, self.b_f1,
                                                         xs_b3n, noise)
            likelihood = lik_blk[:, 0, 0]

        l_nchw = l_flat.reshape(B, OUT_FEATURES, H, W)          # PyTorch layout, free reshape
        samples = s_flat.reshape(B, OUT_CH, H, W)

        distr_kwargs = {'mean': None, 'all_params': l_nchw}
        data = LikelihoodData(likelihood=likelihood, distribution=None,
                              mean=samples, mode=samples, variance=None,
                              samples=samples, distribution_kwargs=distr_kwargs)
        return likelihood, data


# ----------------------------------------------------------------------------- references
def _ref_log_likelihood(x_scaled, l_bhwc):
    nr = NR_MIX
    logit = l_bhwc[..., :nr]
    rest = l_bhwc[..., nr:].reshape(l_bhwc.shape[:3] + (3, 3 * nr))
    means = rest[..., :nr]
    log_scales = jnp.maximum(rest[..., nr:2 * nr], -7.0)
    coeffs = jnp.tanh(rest[..., 2 * nr:3 * nr])
    xe = x_scaled[..., None]
    m2 = means[..., 1, :] + coeffs[..., 0, :] * xe[..., 0, :]
    m3 = (means[..., 2, :] + coeffs[..., 1, :] * xe[..., 0, :]
          + coeffs[..., 2, :] * xe[..., 1, :])
    means = jnp.stack([means[..., 0, :], m2, m3], axis=3)
    centered = xe - means
    inv = jnp.exp(-log_scales)
    sp = jax.nn.softplus
    plus_in = inv * (centered + 1.0 / 255.0)
    min_in = inv * (centered - 1.0 / 255.0)
    cdf_plus = jax.nn.sigmoid(plus_in)
    cdf_min = jax.nn.sigmoid(min_in)
    log_cdf_plus = plus_in - sp(plus_in)
    log_omcm = -sp(min_in)
    cdf_delta = cdf_plus - cdf_min
    mid_in = inv * centered
    log_pdf_mid = mid_in - log_scales - 2.0 * sp(mid_in)
    iic = (cdf_delta > 1e-5).astype(jnp.float32)
    iio = iic * jnp.log(jnp.maximum(cdf_delta, 1e-12)) + (1 - iic) * (log_pdf_mid - np.log(127.5))
    ic = (xe > 0.999).astype(jnp.float32)
    io = ic * log_omcm + (1 - ic) * iio
    c = (xe < -0.999).astype(jnp.float32)
    lp = c * log_cdf_plus + (1 - c) * io
    lp = lp.sum(axis=3) + jax.nn.log_softmax(logit, axis=-1)
    lp = jax.scipy.special.logsumexp(lp, axis=-1)
    return lp.sum(axis=(1, 2))


def _ref_sample(l_nchw, u_brn):
    B, F, H, W = l_nchw.shape
    nr = NR_MIX
    l = jnp.transpose(l_nchw, (0, 2, 3, 1))                # NHWC
    logit = l[..., :nr]
    rest = l[..., nr:].reshape(B, H, W, 3, 3 * nr)
    u = u_brn.reshape(B, N_RAND, H, W)
    gumb = jnp.transpose(u[:, :nr], (0, 2, 3, 1))          # (B, H, W, nr)
    g = logit - jnp.log(-jnp.log(gumb))
    sel = jax.nn.one_hot(jnp.argmax(g, axis=-1), nr, dtype=jnp.float32)
    means = jnp.sum(rest[..., :nr] * sel[..., None, :], axis=-1)
    logsc = jnp.maximum(jnp.sum(rest[..., nr:2 * nr] * sel[..., None, :], axis=-1), -7.0)
    coefs = jnp.sum(jnp.tanh(rest[..., 2 * nr:3 * nr]) * sel[..., None, :], axis=-1)
    un = jnp.transpose(u[:, nr:nr + 3], (0, 2, 3, 1))      # (B, H, W, 3)
    xr = means + jnp.exp(logsc) * (jnp.log(un) - jnp.log(1.0 - un))
    x0 = jnp.clip(xr[..., 0], -1.0, 1.0)
    x1 = jnp.clip(xr[..., 1] + coefs[..., 0] * x0, -1.0, 1.0)
    x2 = jnp.clip(xr[..., 2] + coefs[..., 1] * x0 + coefs[..., 2] * x1, -1.0, 1.0)
    out = jnp.clip((jnp.stack([x0, x1, x2], axis=-1) + 1.0) * 0.5, 0.0, 1.0)
    return jnp.transpose(out, (0, 3, 1, 2))                # NCHW


# ----------------------------------------------------------------------------- main
if __name__ == "__main__":
    key = jax.random.PRNGKey(0)
    kx, kxp, kmod = jax.random.split(key, 3)

    B, Cin, H, W = 2, 4, 16, 16
    x_p = jax.random.normal(kxp, (B, Cin, H, W), jnp.float32)
    x_u8 = jax.random.randint(kx, (B, 3, H, W), 0, 256)
    x = x_u8.astype(jnp.float32) / 255.0                     # "uint8 rescaled by 1/255"

    module = DiscretizedLogisticMixLikelihoodConv2d((Cin, H, W), (3, H, W), key=kmod)
    likelihood, data = module.forward(x_p, x, seed=42)
    jax.block_until_ready((likelihood, data.samples,
                           data.distribution_kwargs['all_params']))

    # --- check the fused 1x1 conv output (all_params, NCHW) ---
    l_nchw = data.distribution_kwargs['all_params']
    l_ref = (jnp.einsum('fc,bchw->bfhw', module.w_fc, x_p)
             + module.b_f1.reshape(1, OUT_FEATURES, 1, 1))
    np.testing.assert_allclose(np.asarray(l_nchw), np.asarray(l_ref),
                               rtol=1e-4, atol=1e-4)

    # --- check the log-likelihood against a pure-JAX reference ---
    x_scaled_nhwc = jnp.transpose(x, (0, 2, 3, 1)) * 2.0 - 1.0
    lik_ref = _ref_log_likelihood(x_scaled_nhwc, jnp.transpose(l_nchw, (0, 2, 3, 1)))
    np.testing.assert_allclose(np.asarray(likelihood), np.asarray(lik_ref),
                               rtol=2e-3, atol=1.0)

    # --- check the rsample against a pure-JAX reference using the same uniforms ---
    u_same = jax.random.uniform(jax.random.PRNGKey(42), (B, N_RAND, H * W),
                                jnp.float32, minval=1e-5, maxval=1.0 - 1e-5)
    s_ref = _ref_sample(l_nchw, u_same)
    mismatch = np.mean(np.abs(np.asarray(data.samples) - np.asarray(s_ref)) > 1e-3)
    assert mismatch < 0.01, f"sample mismatch fraction {mismatch}"

    s = np.asarray(data.samples)
    assert s.shape == (B, 3, H, W)
    assert np.isfinite(s).all() and s.min() >= 0.0 and s.max() <= 1.0
    assert likelihood.shape == (B,)

    # --- exercise the sample-only kernel variant (x is None: prior sampling path) ---
    lik_none, data_none = module.forward(x_p, None, seed=7)
    jax.block_until_ready(data_none.samples)
    assert lik_none is None
    s2 = np.asarray(data_none.samples)
    assert np.isfinite(s2).all() and s2.min() >= 0.0 and s2.max() <= 1.0

    print("KERNEL_OK")
</pallas_src>

<mosaic_0001>
module attributes {stable_mosaic.version = 11 : i64} {
  func.func @_fused_dmol_kernel(%arg0: i32, %arg1: i32, %arg2: memref<1x4x256xf32, #tpu.memory_space<vmem>>, %arg3: memref<100x4xf32, #tpu.memory_space<vmem>>, %arg4: memref<100x1xf32, #tpu.memory_space<vmem>>, %arg5: memref<1x3x256xf32, #tpu.memory_space<vmem>>, %arg6: memref<1x13x256xf32, #tpu.memory_space<vmem>>, %arg7: memref<1x100x256xf32, #tpu.memory_space<vmem>>, %arg8: memref<1x3x256xf32, #tpu.memory_space<vmem>>, %arg9: memref<1x1x128xf32, #tpu.memory_space<vmem>>) attributes {dimension_semantics = [#tpu.dimension_semantics<parallel>, #tpu.dimension_semantics<arbitrary>], iteration_bounds = array<i64: 2, 1>, scalar_prefetch = 0 : i64, scratch_operands = 0 : i64, tpu.core_type = #tpu.core_type<tc>, window_params = [{transform_indices = @transform_0, window_bounds = array<i64: 1, 4, 256>}, {pipeline_mode = #tpu.pipeline_mode<synchronous>, transform_indices = @transform_1, window_bounds = array<i64: 100, 4>}, {pipeline_mode = #tpu.pipeline_mode<synchronous>, transform_indices = @transform_2, window_bounds = array<i64: 100, 1>}, {transform_indices = @transform_3, window_bounds = array<i64: 1, 3, 256>}, {transform_indices = @transform_4, window_bounds = array<i64: 1, 13, 256>}, {transform_indices = @transform_5, window_bounds = array<i64: 1, 100, 256>}, {transform_indices = @transform_6, window_bounds = array<i64: 1, 3, 256>}, {transform_indices = @transform_7, window_bounds = array<i64: 1, 1, 128>}]} {
    %c0 = arith.constant 0 : index
    %c0_0 = arith.constant 0 : index
    %0 = vector.load %arg3[%c0, %c0_0] : memref<100x4xf32, #tpu.memory_space<vmem>>, vector<100x4xf32>
    %c0_1 = arith.constant 0 : index
    %c0_2 = arith.constant 0 : index
    %c0_3 = arith.constant 0 : index
    %1 = vector.load %arg2[%c0_1, %c0_2, %c0_3] : memref<1x4x256xf32, #tpu.memory_space<vmem>>, vector<1x4x256xf32>
    %2 = vector.shape_cast %1 : vector<1x4x256xf32> to vector<4x256xf32>
    %cst = arith.constant dense<0.000000e+00> : vector<100x256xf32>
    %3 = tpu.matmul %0, %2, %cst {dimension_numbers = #tpu.dot_dimension_numbers<[1], [0], [0], [1], [0, 0, 1, 1], [], []>} : vector<100x4xf32>, vector<4x256xf32>, vector<100x256xf32> -> vector<100x256xf32>
    %c0_4 = arith.constant 0 : index
    %c0_5 = arith.constant 0 : index
    %4 = vector.load %arg4[%c0_4, %c0_5] : memref<100x1xf32, #tpu.memory_space<vmem>>, vector<100x1xf32>
    %5 = vector.broadcast %4 : vector<100x1xf32> to vector<100x256xf32>
    %6 = arith.addf %3, %5 : vector<100x256xf32>
    %c0_6 = arith.constant 0 : index
    %c0_7 = arith.constant 0 : index
    %c0_8 = arith.constant 0 : index
    %7 = vector.load %arg7[%c0_6, %c0_7, %c0_8] : memref<1x100x256xf32, #tpu.memory_space<vmem>>, vector<1x100x256xf32>
    %8 = vector.shape_cast %7 : vector<1x100x256xf32> to vector<100x256xf32>
    %9 = vector.shape_cast %6 : vector<100x256xf32> to vector<1x100x256xf32>
    tpu.vector_store %arg7[%c0_6, %c0_7, %c0_8], %9 {strides = array<i32>} : memref<1x100x256xf32, #tpu.memory_space<vmem>>, vector<1x100x256xf32>,
    %10 = vector.extract_strided_slice %6 {offsets = [0, 0], sizes = [10, 256], strides = [1, 1]} : vector<100x256xf32> to vector<10x256xf32>
    %11 = vector.extract_strided_slice %6 {offsets = [10, 0], sizes = [10, 256], strides = [1, 1]} : vector<100x256xf32> to vector<10x256xf32>
    %12 = vector.extract_strided_slice %6 {offsets = [40, 0], sizes = [10, 256], strides = [1, 1]} : vector<100x256xf32> to vector<10x256xf32>
    %13 = vector.extract_strided_slice %6 {offsets = [70, 0], sizes = [10, 256], strides = [1, 1]} : vector<100x256xf32> to vector<10x256xf32>
    %14 = tpu.concatenate %11, %12, %13 in 0 : vector<10x256xf32>, vector<10x256xf32>, vector<10x256xf32> -> vector<30x256xf32>
    %15 = vector.extract_strided_slice %6 {offsets = [20, 0], sizes = [10, 256], strides = [1, 1]} : vector<100x256xf32> to vector<10x256xf32>
    %16 = vector.extract_strided_slice %6 {offsets = [50, 0], sizes = [10, 256], strides = [1, 1]} : vector<100x256xf32> to vector<10x256xf32>
    %17 = vector.extract_strided_slice %6 {offsets = [80, 0], sizes = [10, 256], strides = [1, 1]} : vector<100x256xf32> to vector<10x256xf32>
    %18 = tpu.concatenate %15, %16, %17 in 0 : vector<10x256xf32>, vector<10x256xf32>, vector<10x256xf32> -> vector<30x256xf32>
    %cst_9 = arith.constant -7.000000e+00 : f32
    %19 = vector.broadcast %cst_9 : f32 to vector<30x256xf32>
    %20 = arith.maximumf %18, %19 : vector<30x256xf32>
    %21 = vector.extract_strided_slice %6 {offsets = [30, 0], sizes = [10, 256], strides = [1, 1]} : vector<100x256xf32> to vector<10x256xf32>
    %22 = vector.extract_strided_slice %6 {offsets = [60, 0], sizes = [10, 256], strides = [1, 1]} : vector<100x256xf32> to vector<10x256xf32>
    %23 = vector.extract_strided_slice %6 {offsets = [90, 0], sizes = [10, 256], strides = [1, 1]} : vector<100x256xf32> to vector<10x256xf32>
    %24 = tpu.concatenate %21, %22, %23 in 0 : vector<10x256xf32>, vector<10x256xf32>, vector<10x256xf32> -> vector<30x256xf32>
    %25 = math.tanh %24 : vector<30x256xf32>
    %c0_10 = arith.constant 0 : index
    %c0_11 = arith.constant 0 : index
    %c0_12 = arith.constant 0 : index
    %26 = vector.load %arg6[%c0_10, %c0_11, %c0_12] : memref<1x13x256xf32, #tpu.memory_space<vmem>>, vector<1x13x256xf32>
    %27 = vector.shape_cast %26 : vector<1x13x256xf32> to vector<13x256xf32>
    %28 = vector.extract_strided_slice %27 {offsets = [0, 0], sizes = [10, 256], strides = [1, 1]} : vector<13x256xf32> to vector<10x256xf32>
    %29 = arith.addf %10, %28 : vector<10x256xf32>
    %cst_13 = arith.constant dense<0xFF800000> : vector<256xf32>
    %30 = vector.multi_reduction <maximumf>, %29, %cst_13 [0] : vector<10x256xf32> to vector<256xf32>
    %31 = vector.shape_cast %30 : vector<256xf32> to vector<1x256xf32>
    %32 = tpu.iota {dimensions = array<i32: 0>} : vector<10x256xi32>
    %33 = arith.sitofp %32 : vector<10x256xi32> to vector<10x256xf32>
    %34 = vector.broadcast %31 : vector<1x256xf32> to vector<10x256xf32>
    %35 = arith.cmpf oeq, %29, %34 : vector<10x256xf32>
    %cst_14 = arith.constant 1.000000e+01 : f32
    %36 = vector.broadcast %cst_14 : f32 to vector<10x256xf32>
    %37 = arith.select %35, %33, %36 : vector<10x256xi1>, vector<10x256xf32>
    %cst_15 = arith.constant dense<0x7F800000> : vector<256xf32>
    %38 = vector.multi_reduction <minimumf>, %37, %cst_15 [0] : vector<10x256xf32> to vector<256xf32>
    %39 = vector.shape_cast %38 : vector<256xf32> to vector<1x256xf32>
    %40 = vector.broadcast %39 : vector<1x256xf32> to vector<10x256xf32>
    %41 = arith.cmpf oeq, %33, %40 : vector<10x256xf32>
    %42 = arith.extui %41 : vector<10x256xi1> to vector<10x256xi32>
    %43 = arith.sitofp %42 : vector<10x256xi32> to vector<10x256xf32>
    %44 = vector.extract_strided_slice %14 {offsets = [0, 0], sizes = [10, 256], strides = [1, 1]} : vector<30x256xf32> to vector<10x256xf32>
    %45 = arith.mulf %44, %43 : vector<10x256xf32>
    %cst_16 = arith.constant dense<0.000000e+00> : vector<256xf32>
    %46 = vector.multi_reduction <add>, %45, %cst_16 [0] : vector<10x256xf32> to vector<256xf32>
    %47 = vector.shape_cast %46 : vector<256xf32> to vector<1x256xf32>
    %48 = vector.extract_strided_slice %14 {offsets = [10, 0], sizes = [10, 256], strides = [1, 1]} : vector<30x256xf32> to vector<10x256xf32>
    %49 = arith.mulf %48, %43 : vector<10x256xf32>
    %cst_17 = arith.constant dense<0.000000e+00> : vector<256xf32>
    %50 = vector.multi_reduction <add>, %49, %cst_17 [0] : vector<10x256xf32> to vector<256xf32>
    %51 = vector.shape_cast %50 : vector<256xf32> to vector<1x256xf32>
    %52 = vector.extract_strided_slice %14 {offsets = [20, 0], sizes = [10, 256], strides = [1, 1]} : vector<30x256xf32> to vector<10x256xf32>
    %53 = arith.mulf %52, %43 : vector<10x256xf32>
    %cst_18 = arith.constant dense<0.000000e+00> : vector<256xf32>
    %54 = vector.multi_reduction <add>, %53, %cst_18 [0] : vector<10x256xf32> to vector<256xf32>
    %55 = vector.shape_cast %54 : vector<256xf32> to vector<1x256xf32>
    %56 = tpu.concatenate %47, %51, %55 in 0 : vector<1x256xf32>, vector<1x256xf32>, vector<1x256xf32> -> vector<3x256xf32>
    %57 = vector.extract_strided_slice %20 {offsets = [0, 0], sizes = [10, 256], strides = [1, 1]} : vector<30x256xf32> to vector<10x256xf32>
    %58 = arith.mulf %57, %43 : vector<10x256xf32>
    %cst_19 = arith.constant dense<0.000000e+00> : vector<256xf32>
    %59 = vector.multi_reduction <add>, %58, %cst_19 [0] : vector<10x256xf32> to vector<256xf32>
    %60 = vector.shape_cast %59 : vector<256xf32> to vector<1x256xf32>
    %61 = vector.extract_strided_slice %20 {offsets = [10, 0], sizes = [10, 256], strides = [1, 1]} : vector<30x256xf32> to vector<10x256xf32>
    %62 = arith.mulf %61, %43 : vector<10x256xf32>
    %cst_20 = arith.constant dense<0.000000e+00> : vector<256xf32>
    %63 = vector.multi_reduction <add>, %62, %cst_20 [0] : vector<10x256xf32> to vector<256xf32>
    %64 = vector.shape_cast %63 : vector<256xf32> to vector<1x256xf32>
    %65 = vector.extract_strided_slice %20 {offsets = [20, 0], sizes = [10, 256], strides = [1, 1]} : vector<30x256xf32> to vector<10x256xf32>
    %66 = arith.mulf %65, %43 : vector<10x256xf32>
    %cst_21 = arith.constant dense<0.000000e+00> : vector<256xf32>
    %67 = vector.multi_reduction <add>, %66, %cst_21 [0] : vector<10x256xf32> to vector<256xf32>
    %68 = vector.shape_cast %67 : vector<256xf32> to vector<1x256xf32>
    %69 = tpu.concatenate %60, %64, %68 in 0 : vector<1x256xf32>, vector<1x256xf32>, vector<1x256xf32> -> vector<3x256xf32>
    %70 = vector.extract_strided_slice %25 {offsets = [0, 0], sizes = [10, 256], strides = [1, 1]} : vector<30x256xf32> to vector<10x256xf32>
    %71 = arith.mulf %70, %43 : vector<10x256xf32>
    %cst_22 = arith.constant dense<0.000000e+00> : vector<256xf32>
    %72 = vector.multi_reduction <add>, %71, %cst_22 [0] : vector<10x256xf32> to vector<256xf32>
    %73 = vector.shape_cast %72 : vector<256xf32> to vector<1x256xf32>
    %74 = vector.extract_strided_slice %25 {offsets = [10, 0], sizes = [10, 256], strides = [1, 1]} : vector<30x256xf32> to vector<10x256xf32>
    %75 = arith.mulf %74, %43 : vector<10x256xf32>
    %cst_23 = arith.constant dense<0.000000e+00> : vector<256xf32>
    %76 = vector.multi_reduction <add>, %75, %cst_23 [0] : vector<10x256xf32> to vector<256xf32>
    %77 = vector.shape_cast %76 : vector<256xf32> to vector<1x256xf32>
    %78 = vector.extract_strided_slice %25 {offsets = [20, 0], sizes = [10, 256], strides = [1, 1]} : vector<30x256xf32> to vector<10x256xf32>
    %79 = arith.mulf %78, %43 : vector<10x256xf32>
    %cst_24 = arith.constant dense<0.000000e+00> : vector<256xf32>
    %80 = vector.multi_reduction <add>, %79, %cst_24 [0] : vector<10x256xf32> to vector<256xf32>
    %81 = vector.shape_cast %80 : vector<256xf32> to vector<1x256xf32>
    %82 = tpu.concatenate %73, %77, %81 in 0 : vector<1x256xf32>, vector<1x256xf32>, vector<1x256xf32> -> vector<3x256xf32>
    %83 = math.exp %69 : vector<3x256xf32>
    %84 = vector.extract_strided_slice %27 {offsets = [10, 0], sizes = [3, 256], strides = [1, 1]} : vector<13x256xf32> to vector<3x256xf32>
    %85 = arith.mulf %83, %84 : vector<3x256xf32>
    %86 = arith.addf %56, %85 : vector<3x256xf32>
    %87 = vector.extract_strided_slice %86 {offsets = [0, 0], sizes = [1, 256], strides = [1, 1]} : vector<3x256xf32> to vector<1x256xf32>
    %cst_25 = arith.constant -1.000000e+00 : f32
    %cst_26 = arith.constant 1.000000e+00 : f32
    %88 = vector.broadcast %cst_25 : f32 to vector<1x256xf32>
    %89 = arith.maximumf %88, %87 : vector<1x256xf32>
    %90 = vector.broadcast %cst_26 : f32 to vector<1x256xf32>
    %91 = arith.minimumf %90, %89 : vector<1x256xf32>
    %92 = vector.extract_strided_slice %86 {offsets = [1, 0], sizes = [1, 256], strides = [1, 1]} : vector<3x256xf32> to vector<1x256xf32>
    %93 = vector.extract_strided_slice %82 {offsets = [0, 0], sizes = [1, 256], strides = [1, 1]} : vector<3x256xf32> to vector<1x256xf32>
    %94 = arith.mulf %93, %91 : vector<1x256xf32>
    %95 = arith.addf %92, %94 : vector<1x256xf32>
    %cst_27 = arith.constant -1.000000e+00 : f32
    %cst_28 = arith.constant 1.000000e+00 : f32
    %96 = vector.broadcast %cst_27 : f32 to vector<1x256xf32>
    %97 = arith.maximumf %96, %95 : vector<1x256xf32>
    %98 = vector.broadcast %cst_28 : f32 to vector<1x256xf32>
    %99 = arith.minimumf %98, %97 : vector<1x256xf32>
    %100 = vector.extract_strided_slice %86 {offsets = [2, 0], sizes = [1, 256], strides = [1, 1]} : vector<3x256xf32> to vector<1x256xf32>
    %101 = vector.extract_strided_slice %82 {offsets = [1, 0], sizes = [1, 256], strides = [1, 1]} : vector<3x256xf32> to vector<1x256xf32>
    %102 = arith.mulf %101, %91 : vector<1x256xf32>
    %103 = arith.addf %100, %102 : vector<1x256xf32>
    %104 = vector.extract_strided_slice %82 {offsets = [2, 0], sizes = [1, 256], strides = [1, 1]} : vector<3x256xf32> to vector<1x256xf32>
    %105 = arith.mulf %104, %99 : vector<1x256xf32>
    %106 = arith.addf %103, %105 : vector<1x256xf32>
    %cst_29 = arith.constant -1.000000e+00 : f32
    %cst_30 = arith.constant 1.000000e+00 : f32
    %107 = vector.broadcast %cst_29 : f32 to vector<1x256xf32>
    %108 = arith.maximumf %107, %106 : vector<1x256xf32>
    %109 = vector.broadcast %cst_30 : f32 to vector<1x256xf32>
    %110 = arith.minimumf %109, %108 : vector<1x256xf32>
    %111 = tpu.concatenate %91, %99, %110 in 0 : vector<1x256xf32>, vector<1x256xf32>, vector<1x256xf32> -> vector<3x256xf32>
    %cst_31 = arith.constant 1.000000e+00 : f32
    %112 = vector.broadcast %cst_31 : f32 to vector<3x256xf32>
    %113 = arith.addf %111, %112 : vector<3x256xf32>
    %cst_32 = arith.constant 5.000000e-01 : f32
    %114 = vector.broadcast %cst_32 : f32 to vector<3x256xf32>
    %115 = arith.mulf %113, %114 : vector<3x256xf32>
    %cst_33 = arith.constant 0.000000e+00 : f32
    %cst_34 = arith.constant 1.000000e+00 : f32
    %116 = vector.broadcast %cst_33 : f32 to vector<3x256xf32>
    %117 = arith.maximumf %116, %115 : vector<3x256xf32>
    %118 = vector.broadcast %cst_34 : f32 to vector<3x256xf32>
    %119 = arith.minimumf %118, %117 : vector<3x256xf32>
    %c0_35 = arith.constant 0 : index
    %c0_36 = arith.constant 0 : index
    %c0_37 = arith.constant 0 : index
    %120 = vector.load %arg8[%c0_35, %c0_36, %c0_37] : memref<1x3x256xf32, #tpu.memory_space<vmem>>, vector<1x3x256xf32>
    %121 = vector.shape_cast %120 : vector<1x3x256xf32> to vector<3x256xf32>
    %122 = vector.shape_cast %119 : vector<3x256xf32> to vector<1x3x256xf32>
    tpu.vector_store %arg8[%c0_35, %c0_36, %c0_37], %122 {strides = array<i32>} : memref<1x3x256xf32, #tpu.memory_space<vmem>>, vector<1x3x256xf32>,
    %c0_38 = arith.constant 0 : index
    %c0_39 = arith.constant 0 : index
    %c0_40 = arith.constant 0 : index
    %123 = vector.load %arg5[%c0_38, %c0_39, %c0_40] : memref<1x3x256xf32, #tpu.memory_space<vmem>>, vector<1x3x256xf32>
    %124 = vector.shape_cast %123 : vector<1x3x256xf32> to vector<3x256xf32>
    %125 = vector.extract_strided_slice %124 {offsets = [0, 0], sizes = [1, 256], strides = [1, 1]} : vector<3x256xf32> to vector<1x256xf32>
    %126 = vector.extract_strided_slice %124 {offsets = [1, 0], sizes = [1, 256], strides = [1, 1]} : vector<3x256xf32> to vector<1x256xf32>
    %127 = vector.extract_strided_slice %124 {offsets = [2, 0], sizes = [1, 256], strides = [1, 1]} : vector<3x256xf32> to vector<1x256xf32>
    %128 = vector.extract_strided_slice %25 {offsets = [0, 0], sizes = [10, 256], strides = [1, 1]} : vector<30x256xf32> to vector<10x256xf32>
    %129 = vector.extract_strided_slice %25 {offsets = [10, 0], sizes = [10, 256], strides = [1, 1]} : vector<30x256xf32> to vector<10x256xf32>
    %130 = vector.extract_strided_slice %25 {offsets = [20, 0], sizes = [10, 256], strides = [1, 1]} : vector<30x256xf32> to vector<10x256xf32>
    %131 = vector.extract_strided_slice %14 {offsets = [0, 0], sizes = [10, 256], strides = [1, 1]} : vector<30x256xf32> to vector<10x256xf32>
    %132 = vector.extract_strided_slice %14 {offsets = [10, 0], sizes = [10, 256], strides = [1, 1]} : vector<30x256xf32> to vector<10x256xf32>
    %133 = vector.broadcast %125 : vector<1x256xf32> to vector<10x256xf32>
    %134 = arith.mulf %128, %133 : vector<10x256xf32>
    %135 = arith.addf %132, %134 : vector<10x256xf32>
    %136 = vector.extract_strided_slice %14 {offsets = [20, 0], sizes = [10, 256], strides = [1, 1]} : vector<30x256xf32> to vector<10x256xf32>
    %137 = vector.broadcast %125 : vector<1x256xf32> to vector<10x256xf32>
    %138 = arith.mulf %129, %137 : vector<10x256xf32>
    %139 = arith.addf %136, %138 : vector<10x256xf32>
    %140 = vector.broadcast %126 : vector<1x256xf32> to vector<10x256xf32>
    %141 = arith.mulf %130, %140 : vector<10x256xf32>
    %142 = arith.addf %139, %141 : vector<10x256xf32>
    %143 = tpu.concatenate %131, %135, %142 in 0 : vector<10x256xf32>, vector<10x256xf32>, vector<10x256xf32> -> vector<30x256xf32>
    %144 = vector.shape_cast %125 : vector<1x256xf32> to vector<1x256xf32>
    %145 = vector.broadcast %144 : vector<1x256xf32> to vector<10x256xf32>
    %146 = vector.shape_cast %126 : vector<1x256xf32> to vector<1x256xf32>
    %147 = vector.broadcast %146 : vector<1x256xf32> to vector<10x256xf32>
    %148 = vector.shape_cast %127 : vector<1x256xf32> to vector<1x256xf32>
    %149 = vector.broadcast %148 : vector<1x256xf32> to vector<10x256xf32>
    %150 = tpu.concatenate %145, %147, %149 in 0 : vector<10x256xf32>, vector<10x256xf32>, vector<10x256xf32> -> vector<30x256xf32>
    %151 = arith.subf %150, %143 : vector<30x256xf32>
    %cst_41 = arith.constant 0.000000e+00 : f32
    %152 = vector.broadcast %cst_41 : f32 to vector<30x256xf32>
    %153 = arith.subf %152, %20 : vector<30x256xf32>
    %154 = math.exp %153 : vector<30x256xf32>
    %cst_42 = arith.constant 0.00392156886 : f32
    %155 = vector.broadcast %cst_42 : f32 to vector<30x256xf32>
    %156 = arith.addf %151, %155 : vector<30x256xf32>
    %157 = arith.mulf %154, %156 : vector<30x256xf32>
    %cst_43 = arith.constant 0.00392156886 : f32
    %158 = vector.broadcast %cst_43 : f32 to vector<30x256xf32>
    %159 = arith.subf %151, %158 : vector<30x256xf32>
    %160 = arith.mulf %154, %159 : vector<30x256xf32>
    %cst_44 = arith.constant 0.000000e+00 : f32
    %161 = vector.broadcast %cst_44 : f32 to vector<30x256xf32>
    %162 = arith.maximumf %157, %161 : vector<30x256xf32>
    %163 = math.absf %157 : vector<30x256xf32>
    %cst_45 = arith.constant 0.000000e+00 : f32
    %164 = vector.broadcast %cst_45 : f32 to vector<30x256xf32>
    %165 = arith.subf %164, %163 : vector<30x256xf32>
    %166 = math.exp %165 : vector<30x256xf32>
    %cst_46 = arith.constant 1.000000e+00 : f32
    %167 = vector.broadcast %cst_46 : f32 to vector<30x256xf32>
    %168 = arith.addf %167, %166 : vector<30x256xf32>
    %169 = math.log %168 : vector<30x256xf32>
    %170 = arith.addf %162, %169 : vector<30x256xf32>
    %cst_47 = arith.constant 0.000000e+00 : f32
    %171 = vector.broadcast %cst_47 : f32 to vector<30x256xf32>
    %172 = arith.maximumf %160, %171 : vector<30x256xf32>
    %173 = math.absf %160 : vector<30x256xf32>
    %cst_48 = arith.constant 0.000000e+00 : f32
    %174 = vector.broadcast %cst_48 : f32 to vector<30x256xf32>
    %175 = arith.subf %174, %173 : vector<30x256xf32>
    %176 = math.exp %175 : vector<30x256xf32>
    %cst_49 = arith.constant 1.000000e+00 : f32
    %177 = vector.broadcast %cst_49 : f32 to vector<30x256xf32>
    %178 = arith.addf %177, %176 : vector<30x256xf32>
    %179 = math.log %178 : vector<30x256xf32>
    %180 = arith.addf %172, %179 : vector<30x256xf32>
    %181 = arith.subf %157, %170 : vector<30x256xf32>
    %cst_50 = arith.constant 0.000000e+00 : f32
    %182 = vector.broadcast %cst_50 : f32 to vector<30x256xf32>
    %183 = arith.subf %182, %180 : vector<30x256xf32>
    %184 = math.exp %181 : vector<30x256xf32>
    %185 = arith.subf %160, %180 : vector<30x256xf32>
    %186 = math.exp %185 : vector<30x256xf32>
    %187 = arith.subf %184, %186 : vector<30x256xf32>
    %188 = arith.mulf %154, %151 : vector<30x256xf32>
    %189 = arith.subf %188, %20 : vector<30x256xf32>
    %cst_51 = arith.constant 0.000000e+00 : f32
    %190 = vector.broadcast %cst_51 : f32 to vector<30x256xf32>
    %191 = arith.maximumf %188, %190 : vector<30x256xf32>
    %192 = math.absf %188 : vector<30x256xf32>
    %cst_52 = arith.constant 0.000000e+00 : f32
    %193 = vector.broadcast %cst_52 : f32 to vector<30x256xf32>
    %194 = arith.subf %193, %192 : vector<30x256xf32>
    %195 = math.exp %194 : vector<30x256xf32>
    %cst_53 = arith.constant 1.000000e+00 : f32
    %196 = vector.broadcast %cst_53 : f32 to vector<30x256xf32>
    %197 = arith.addf %196, %195 : vector<30x256xf32>
    %198 = math.log %197 : vector<30x256xf32>
    %199 = arith.addf %191, %198 : vector<30x256xf32>
    %cst_54 = arith.constant 2.000000e+00 : f32
    %200 = vector.broadcast %cst_54 : f32 to vector<30x256xf32>
    %201 = arith.mulf %200, %199 : vector<30x256xf32>
    %202 = arith.subf %189, %201 : vector<30x256xf32>
    %cst_55 = arith.constant 9.99999974E-6 : f32
    %203 = vector.broadcast %cst_55 : f32 to vector<30x256xf32>
    %204 = arith.cmpf ogt, %187, %203 : vector<30x256xf32>
    %cst_56 = arith.constant 9.99999996E-13 : f32
    %205 = vector.broadcast %cst_56 : f32 to vector<30x256xf32>
    %206 = arith.maximumf %187, %205 : vector<30x256xf32>
    %207 = math.log %206 : vector<30x256xf32>
    %cst_57 = arith.constant 4.8481164 : f32
    %208 = vector.broadcast %cst_57 : f32 to vector<30x256xf32>
    %209 = arith.subf %202, %208 : vector<30x256xf32>
    %210 = arith.select %204, %207, %209 : vector<30x256xi1>, vector<30x256xf32>
    %cst_58 = arith.constant 9.990000e-01 : f32
    %211 = vector.broadcast %cst_58 : f32 to vector<30x256xf32>
    %212 = arith.cmpf ogt, %150, %211 : vector<30x256xf32>
    %213 = arith.select %212, %183, %210 : vector<30x256xi1>, vector<30x256xf32>
    %cst_59 = arith.constant -9.990000e-01 : f32
    %214 = vector.broadcast %cst_59 : f32 to vector<30x256xf32>
    %215 = arith.cmpf olt, %150, %214 : vector<30x256xf32>
    %216 = arith.select %215, %181, %213 : vector<30x256xi1>, vector<30x256xf32>
    %217 = vector.extract_strided_slice %216 {offsets = [0, 0], sizes = [10, 256], strides = [1, 1]} : vector<30x256xf32> to vector<10x256xf32>
    %218 = vector.extract_strided_slice %216 {offsets = [10, 0], sizes = [10, 256], strides = [1, 1]} : vector<30x256xf32> to vector<10x256xf32>
    %219 = arith.addf %217, %218 : vector<10x256xf32>
    %220 = vector.extract_strided_slice %216 {offsets = [20, 0], sizes = [10, 256], strides = [1, 1]} : vector<30x256xf32> to vector<10x256xf32>
    %221 = arith.addf %219, %220 : vector<10x256xf32>
    %cst_60 = arith.constant dense<0xFF800000> : vector<256xf32>
    %222 = vector.multi_reduction <maximumf>, %10, %cst_60 [0] : vector<10x256xf32> to vector<256xf32>
    %223 = vector.shape_cast %222 : vector<256xf32> to vector<1x256xf32>
    %224 = vector.broadcast %223 : vector<1x256xf32> to vector<10x256xf32>
    %225 = arith.subf %10, %224 : vector<10x256xf32>
    %226 = math.exp %225 : vector<10x256xf32>
    %cst_61 = arith.constant dense<0.000000e+00> : vector<256xf32>
    %227 = vector.multi_reduction <add>, %226, %cst_61 [0] : vector<10x256xf32> to vector<256xf32>
    %228 = vector.shape_cast %227 : vector<256xf32> to vector<1x256xf32>
    %229 = math.log %228 : vector<1x256xf32>
    %230 = arith.addf %229, %223 : vector<1x256xf32>
    %231 = vector.broadcast %230 : vector<1x256xf32> to vector<10x256xf32>
    %232 = arith.subf %10, %231 : vector<10x256xf32>
    %233 = arith.addf %221, %232 : vector<10x256xf32>
    %cst_62 = arith.constant dense<0xFF800000> : vector<256xf32>
    %234 = vector.multi_reduction <maximumf>, %233, %cst_62 [0] : vector<10x256xf32> to vector<256xf32>
    %235 = vector.shape_cast %234 : vector<256xf32> to vector<1x256xf32>
    %236 = vector.broadcast %235 : vector<1x256xf32> to vector<10x256xf32>
    %237 = arith.subf %233, %236 : vector<10x256xf32>
    %238 = math.exp %237 : vector<10x256xf32>
    %cst_63 = arith.constant dense<0.000000e+00> : vector<256xf32>
    %239 = vector.multi_reduction <add>, %238, %cst_63 [0] : vector<10x256xf32> to vector<256xf32>
    %240 = vector.shape_cast %239 : vector<256xf32> to vector<1x256xf32>
    %241 = math.log %240 : vector<1x256xf32>
    %242 = arith.addf %241, %235 : vector<1x256xf32>
    %243 = vector.shape_cast %242 : vector<1x256xf32> to vector<1x1x256xf32>
    %cst_64 = arith.constant dense<0.000000e+00> : vector<1xf32>
    %244 = vector.multi_reduction <add>, %243, %cst_64 [1, 2] : vector<1x1x256xf32> to vector<1xf32>
    %245 = vector.shape_cast %244 : vector<1xf32> to vector<1x1x1xf32>
    %246 = vector.extract %245[0, 0, 0] : f32 from vector<1x1x1xf32>
    %c0_i32 = arith.constant 0 : i32
    %247 = arith.cmpi eq, %arg1, %c0_i32 : i32
    %248 = arith.extui %247 : i1 to i32
    %c0_i32_65 = arith.constant 0 : i32
    %249 = arith.cmpi ne, %248, %c0_i32_65 : i32
    scf.if %249 {
      %cst_72 = arith.constant 0.000000e+00 : f32
      %257 = vector.broadcast %cst_72 : f32 to vector<1x128xf32>
      %c0_73 = arith.constant 0 : index
      %c0_74 = arith.constant 0 : index
      %c0_75 = arith.constant 0 : index
      %258 = vector.load %arg9[%c0_73, %c0_74, %c0_75] : memref<1x1x128xf32, #tpu.memory_space<vmem>>, vector<1x1x128xf32>
      %259 = vector.shape_cast %258 : vector<1x1x128xf32> to vector<1x128xf32>
      %260 = vector.shape_cast %257 : vector<1x128xf32> to vector<1x1x128xf32>
      tpu.vector_store %arg9[%c0_73, %c0_74, %c0_75], %260 {strides = array<i32>} : memref<1x1x128xf32, #tpu.memory_space<vmem>>, vector<1x1x128xf32>,
    } else {
    }
    %c0_66 = arith.constant 0 : index
    %c0_67 = arith.constant 0 : index
    %c0_68 = arith.constant 0 : index
    %250 = vector.load %arg9[%c0_66, %c0_67, %c0_68] : memref<1x1x128xf32, #tpu.memory_space<vmem>>, vector<1x1x128xf32>
    %251 = vector.shape_cast %250 : vector<1x1x128xf32> to vector<1x128xf32>
    %252 = vector.broadcast %246 : f32 to vector<1x128xf32>
    %253 = arith.addf %251, %252 : vector<1x128xf32>
    %c0_69 = arith.constant 0 : index
    %c0_70 = arith.constant 0 : index
    %c0_71 = arith.constant 0 : index
    %254 = vector.load %arg9[%c0_69, %c0_70, %c0_71] : memref<1x1x128xf32, #tpu.memory_space<vmem>>, vector<1x1x128xf32>
    %255 = vector.shape_cast %254 : vector<1x1x128xf32> to vector<1x128xf32>
    %256 = vector.shape_cast %253 : vector<1x128xf32> to vector<1x1x128xf32>
    tpu.vector_store %arg9[%c0_69, %c0_70, %c0_71], %256 {strides = array<i32>} : memref<1x1x128xf32, #tpu.memory_space<vmem>>, vector<1x1x128xf32>,
    return
  }
  func.func @transform_0(%arg0: i32, %arg1: i32) -> (i32, i32, i32) {
    %c0_i32 = arith.constant 0 : i32
    %c0_i32_0 = arith.constant 0 : i32
    return %arg0, %c0_i32, %arg1 : i32, i32, i32
  }
  func.func @transform_1(%arg0: i32, %arg1: i32) -> (i32, i32) {
    %c0_i32 = arith.constant 0 : i32
    %c0_i32_0 = arith.constant 0 : i32
    %c0_i32_1 = arith.constant 0 : i32
    return %c0_i32, %c0_i32_0 : i32, i32
  }
  func.func @transform_2(%arg0: i32, %arg1: i32) -> (i32, i32) {
    %c0_i32 = arith.constant 0 : i32
    %c0_i32_0 = arith.constant 0 : i32
    %c0_i32_1 = arith.constant 0 : i32
    return %c0_i32, %c0_i32_0 : i32, i32
  }
  func.func @transform_3(%arg0: i32, %arg1: i32) -> (i32, i32, i32) {
    %c0_i32 = arith.constant 0 : i32
    %c0_i32_0 = arith.constant 0 : i32
    return %arg0, %c0_i32, %arg1 : i32, i32, i32
  }
  func.func @transform_4(%arg0: i32, %arg1: i32) -> (i32, i32, i32) {
    %c0_i32 = arith.constant 0 : i32
    %c0_i32_0 = arith.constant 0 : i32
    return %arg0, %c0_i32, %arg1 : i32, i32, i32
  }
  func.func @transform_5(%arg0: i32, %arg1: i32) -> (i32, i32, i32) {
    %c0_i32 = arith.constant 0 : i32
    %c0_i32_0 = arith.constant 0 : i32
    return %arg0, %c0_i32, %arg1 : i32, i32, i32
  }
  func.func @transform_6(%arg0: i32, %arg1: i32) -> (i32, i32, i32) {
    %c0_i32 = arith.constant 0 : i32
    %c0_i32_0 = arith.constant 0 : i32
    return %arg0, %c0_i32, %arg1 : i32, i32, i32
  }
  func.func @transform_7(%arg0: i32, %arg1: i32) -> (i32, i32, i32) {
    %c0_i32 = arith.constant 0 : i32
    %c0_i32_0 = arith.constant 0 : i32
    %c0_i32_1 = arith.constant 0 : i32
    return %arg0, %c0_i32, %c0_i32_0 : i32, i32, i32
  }
}

</mosaic_0001>

<llo_original>
// kernel: tpu_custom_call.1
$region0: #{tpu_custom_call.1}
  #allocation0 [shape = 'u32[]', space=smem, size = 0x4, offset = 0x4, fixed_abs, tag = 'smem constant byte address 0x4 - core index']
  #allocation1 [shape = 'u32[72,128]{1,0:T(1,128)}', space=vmem, size = 0x9000, scoped, tag = 'internal scratch']
  %s0 = inlined_call_operand.vmem [shape: f32[2,4,256], index: 0, kind: input, shape index: {}]
  %s1 = inlined_call_operand.vmem [shape: f32[100,4], index: 1, kind: input, shape index: {}]
  %s2 = inlined_call_operand.vmem [shape: f32[100,1], index: 2, kind: input, shape index: {}]
  %s3 = inlined_call_operand.vmem [shape: f32[2,3,256], index: 3, kind: input, shape index: {}]
  %s4 = inlined_call_operand.vmem [shape: f32[2,13,256], index: 4, kind: input, shape index: {}]
  %s5 = inlined_call_operand.vmem [shape: f32[2,100,256], index: 5, kind: output, shape index: {0}]
  %s6 = inlined_call_operand.vmem [shape: f32[2,3,256], index: 6, kind: output, shape index: {1}]
  %s7 = inlined_call_operand.hbm [shape: f32[2,1,128], index: 7, kind: output, shape index: {2}]
  %8 = xla_tuple %s5, %s6, %s7
  %s9 = sld [smem:[#allocation0]]
  $region73: #{tpu_custom_call.1} parent=0
    _
  %s11 = ssub.s32 1, %s9
  %s12 = scalar_select 0, %s11, %s9
  $region1: #{tpu_custom_call.1} parent=0
    #allocation2 [shape = 'u8[1024]{0}', space=vmem, size = 0x400, scoped, tag = 'output window, operand 2']
    #allocation3 [shape = 's32[2]{0}', space=sflag, size = 0x8, scoped, tag = 'scoped memory for tpu_custom_call.1']
    %13 = vsyncpa [#allocation3], 0
    %s14 = scalar_lea.sflag [#allocation3], 1
    %15 = vsyncpa %s14, 0
    loop: start=0, step=1, limit=4
    $region2: #{tpu_custom_call.1} parent=1 // loop_pre_header
      _
    $region3: #{tpu_custom_call.1} parent=1 // loop_header
      %s17 = sphi 0, %s21
      %p18 = scmp.ge.s32.totalorder %s17, 4
      %s24 = sphi 0, %s36
      %s25 = sphi 0, %s32
      %s26 = sphi 0, %s24
      %s27 = sphi 0, %s25
      %s28 = sphi 0, %s26
      %s29 = sphi 0, %s27
      %s41 = sphi 0, %s43
      %s44 = sphi 0, %s41
      %s45 = sphi 0, %s44
      %s61 = sphi 0, %s45
      %s65 = sphi 0, %s65
      %s67 = sphi 0, %s65
      %s68 = sphi 0, %s67
      %s82 = sphi 0, %s68
      %s86 = sphi 0, %s86
      %s88 = sphi 0, %s86
      %s89 = sphi 0, %s88
      %s103 = sphi 0, %s89
      %s111 = sphi 0, %s113
      %s114 = sphi 0, %s111
      %s115 = sphi 0, %s114
      %s131 = sphi 0, %s115
      %s139 = sphi 0, %s141
      %s142 = sphi 0, %s139
      %s143 = sphi 0, %s142
      %s159 = sphi 0, %s143
      %s167 = sphi 0, %s169
      %s170 = sphi 0, %s167
      %s171 = sphi 0, %s170
      %s187 = sphi 0, %s171
      %s195 = sphi 0, %s197
      %s198 = sphi 0, %s195
      %s199 = sphi 0, %s198
      %s215 = sphi 0, %s199
      %s221 = sphi 0, %s223
      %s224 = sphi 0, %s221
      %s225 = sphi 0, %s224
      %s241 = sphi 0, %s225
    $region4: #{tpu_custom_call.1} parent=1 // loop_header_branch
      %20 = sbr.rel (%p18) target = $region8
    $region5: #{tpu_custom_call.1} parent=1 // loop_body
      %s22 = ssub.s32 %s17, 1
      %s23 = ssub.s32 %s17, 2
      %s30 = sadd.s32 1, %s25
      %p31 = scmp.ge.s32.totalorder %s30, 1
      %s32 = scalar_select %p31, 0, %s30
      %s33 = sadd.s32 1, %s24
      %s34 = scalar_select %p31, %s33, %s24
      %p35 = scmp.ge.s32.totalorder %s34, 2
      %s36 = scalar_select %p35, 0, %s34
      %s37 = ssub.s32 %s24, %s36
      %s38 = ssub.s32 %s25, %s32
      %s39 = sor.u32 %s37, %s38
      %p40 = scmp.eq.s32.totalorder %s39, 0
      %s42 = sadd.s32 %s41, 1
      %s43 = scalar_select %p40, %s41, %s42
      %p46 = pneg %p40
      %p47 = scmp.eq.s32.totalorder %s17, 1
      %p48 = por %p46, %p47
      %p49 = scmp.ne.s32.totalorder %s41, %s44
      %p50 = scmp.eq.s32.totalorder %s17, 0
      %p51 = por %p49, %p50
      %p52 = scmp.ne.s32.totalorder %s41, %s44
      %p53 = scmp.eq.s32.totalorder %s22, 1
      %p54 = por %p52, %p53
      %p55 = scmp.ne.s32.totalorder %s44, %s45
      %p56 = scmp.eq.s32.totalorder %s22, 0
      %p57 = por %p55, %p56
      %p58 = scmp.ne.s32.totalorder %s44, %s45
      %p59 = scmp.eq.s32.totalorder %s23, 1
      %p60 = por %p58, %p59
      %p62 = scmp.ne.s32.totalorder %s45, %s61
      %p63 = scmp.eq.s32.totalorder %s23, 0
      %p64 = por %p62, %p63
      %s66 = sadd.s32 %s65, 1
      %p69 = scmp.eq.s32.totalorder %s17, 1
      %p70 = scmp.ne.s32.totalorder %s65, %s67
      %p71 = scmp.eq.s32.totalorder %s17, 0
      %p72 = por %p70, %p71
      %p73 = scmp.ne.s32.totalorder %s65, %s67
      %p74 = scmp.eq.s32.totalorder %s22, 1
      %p75 = por %p73, %p74
      %p76 = scmp.ne.s32.totalorder %s67, %s68
      %p77 = scmp.eq.s32.totalorder %s22, 0
      %p78 = por %p76, %p77
      %p79 = scmp.ne.s32.totalorder %s67, %s68
      %p80 = scmp.eq.s32.totalorder %s23, 1
      %p81 = por %p79, %p80
      %p83 = scmp.ne.s32.totalorder %s68, %s82
      %p84 = scmp.eq.s32.totalorder %s23, 0
      %p85 = por %p83, %p84
      %s87 = sadd.s32 %s86, 1
      %p90 = scmp.eq.s32.totalorder %s17, 1
      %p91 = scmp.ne.s32.totalorder %s86, %s88
      %p92 = scmp.eq.s32.totalorder %s17, 0
      %p93 = por %p91, %p92
      %p94 = scmp.ne.s32.totalorder %s86, %s88
      %p95 = scmp.eq.s32.totalorder %s22, 1
      %p96 = por %p94, %p95
      %p97 = scmp.ne.s32.totalorder %s88, %s89
      %p98 = scmp.eq.s32.totalorder %s22, 0
      %p99 = por %p97, %p98
      %p100 = scmp.ne.s32.totalorder %s88, %s89
      %p101 = scmp.eq.s32.totalorder %s23, 1
      %p102 = por %p100, %p101
      %p104 = scmp.ne.s32.totalorder %s89, %s103
      %p105 = scmp.eq.s32.totalorder %s23, 0
      %p106 = por %p104, %p105
      %s107 = ssub.s32 %s24, %s36
      %s108 = ssub.s32 %s25, %s32
      %s109 = sor.u32 %s107, %s108
      %p110 = scmp.eq.s32.totalorder %s109, 0
      %s112 = sadd.s32 %s111, 1
      %s113 = scalar_select %p110, %s111, %s112
      %p116 = pneg %p110
      %p117 = scmp.eq.s32.totalorder %s17, 1
      %p118 = por %p116, %p117
      %p119 = scmp.ne.s32.totalorder %s111, %s114
      %p120 = scmp.eq.s32.totalorder %s17, 0
      %p121 = por %p119, %p120
      %p122 = scmp.ne.s32.totalorder %s111, %s114
      %p123 = scmp.eq.s32.totalorder %s22, 1
      %p124 = por %p122, %p123
      %p125 = scmp.ne.s32.totalorder %s114, %s115
      %p126 = scmp.eq.s32.totalorder %s22, 0
      %p127 = por %p125, %p126
      %p128 = scmp.ne.s32.totalorder %s114, %s115
      %p129 = scmp.eq.s32.totalorder %s23, 1
      %p130 = por %p128, %p129
      %p132 = scmp.ne.s32.totalorder %s115, %s131
      %p133 = scmp.eq.s32.totalorder %s23, 0
      %p134 = por %p132, %p133
      %s135 = ssub.s32 %s24, %s36
      %s136 = ssub.s32 %s25, %s32
      %s137 = sor.u32 %s135, %s136
      %p138 = scmp.eq.s32.totalorder %s137, 0
      %s140 = sadd.s32 %s139, 1
      %s141 = scalar_select %p138, %s139, %s140
      %p144 = pneg %p138
      %p145 = scmp.eq.s32.totalorder %s17, 1
      %p146 = por %p144, %p145
      %p147 = scmp.ne.s32.totalorder %s139, %s142
      %p148 = scmp.eq.s32.totalorder %s17, 0
      %p149 = por %p147, %p148
      %p150 = scmp.ne.s32.totalorder %s139, %s142
      %p151 = scmp.eq.s32.totalorder %s22, 1
      %p152 = por %p150, %p151
      %p153 = scmp.ne.s32.totalorder %s142, %s143
      %p154 = scmp.eq.s32.totalorder %s22, 0
      %p155 = por %p153, %p154
      %p156 = scmp.ne.s32.totalorder %s142, %s143
      %p157 = scmp.eq.s32.totalorder %s23, 1
      %p158 = por %p156, %p157
      %p160 = scmp.ne.s32.totalorder %s143, %s159
      %p161 = scmp.eq.s32.totalorder %s23, 0
      %p162 = por %p160, %p161
      %s163 = ssub.s32 %s24, %s36
      %s164 = ssub.s32 %s25, %s32
      %s165 = sor.u32 %s163, %s164
      %p166 = scmp.eq.s32.totalorder %s165, 0
      %s168 = sadd.s32 %s167, 1
      %s169 = scalar_select %p166, %s167, %s168
      %p172 = pneg %p166
      %p173 = scmp.eq.s32.totalorder %s17, 1
      %p174 = por %p172, %p173
      %p175 = scmp.ne.s32.totalorder %s167, %s170
      %p176 = scmp.eq.s32.totalorder %s17, 0
      %p177 = por %p175, %p176
      %p178 = scmp.ne.s32.totalorder %s167, %s170
      %p179 = scmp.eq.s32.totalorder %s22, 1
      %p180 = por %p178, %p179
      %p181 = scmp.ne.s32.totalorder %s170, %s171
      %p182 = scmp.eq.s32.totalorder %s22, 0
      %p183 = por %p181, %p182
      %p184 = scmp.ne.s32.totalorder %s170, %s171
      %p185 = scmp.eq.s32.totalorder %s23, 1
      %p186 = por %p184, %p185
      %p188 = scmp.ne.s32.totalorder %s171, %s187
      %p189 = scmp.eq.s32.totalorder %s23, 0
      %p190 = por %p188, %p189
      %s191 = ssub.s32 %s24, %s36
      %s192 = ssub.s32 %s25, %s32
      %s193 = sor.u32 %s191, %s192
      %p194 = scmp.eq.s32.totalorder %s193, 0
      %s196 = sadd.s32 %s195, 1
      %s197 = scalar_select %p194, %s195, %s196
      %p200 = pneg %p194
      %p201 = scmp.eq.s32.totalorder %s17, 1
      %p202 = por %p200, %p201
      %p203 = scmp.ne.s32.totalorder %s195, %s198
      %p204 = scmp.eq.s32.totalorder %s17, 0
      %p205 = por %p203, %p204
      %p206 = scmp.ne.s32.totalorder %s195, %s198
      %p207 = scmp.eq.s32.totalorder %s22, 1
      %p208 = por %p206, %p207
      %p209 = scmp.ne.s32.totalorder %s198, %s199
      %p210 = scmp.eq.s32.totalorder %s22, 0
      %p211 = por %p209, %p210
      %p212 = scmp.ne.s32.totalorder %s198, %s199
      %p213 = scmp.eq.s32.totalorder %s23, 1
      %p214 = por %p212, %p213
      %p216 = scmp.ne.s32.totalorder %s199, %s215
      %p217 = scmp.eq.s32.totalorder %s23, 0
      %p218 = por %p216, %p217
      %s219 = ssub.s32 %s24, %s36
      %p220 = scmp.eq.s32.totalorder %s219, 0
      %s222 = sadd.s32 %s221, 1
      %s223 = scalar_select %p220, %s221, %s222
      %p226 = pneg %p220
      %p227 = scmp.eq.s32.totalorder %s17, 1
      %p228 = por %p226, %p227
      %p229 = scmp.ne.s32.totalorder %s221, %s224
      %p230 = scmp.eq.s32.totalorder %s17, 0
      %p231 = por %p229, %p230
      %p232 = scmp.ne.s32.totalorder %s221, %s224
      %p233 = scmp.eq.s32.totalorder %s22, 1
      %p234 = por %p232, %p233
      %p235 = scmp.ne.s32.totalorder %s224, %s225
      %p236 = scmp.eq.s32.totalorder %s22, 0
      %p237 = por %p235, %p236
      %p238 = scmp.ne.s32.totalorder %s224, %s225
      %p239 = scmp.eq.s32.totalorder %s23, 1
      %p240 = por %p238, %p239
      %p242 = scmp.ne.s32.totalorder %s225, %s241
      %p243 = scmp.eq.s32.totalorder %s23, 0
      %p244 = por %p242, %p243
      %p245 = scmp.le.s32.totalorder 1, %s17
      %p246 = scmp.lt.s32.totalorder %s17, 3
      %p247 = pnand %p245, %p246
      %p248 = pneg %p247
      // Predicated region
      $region9: #{tpu_custom_call.1} parent=5 // pred_check
        _
      $region10: #{tpu_custom_call.1} parent=5 // pred_check_branch
        %250 = sbr.rel (%p247) target = $region12
      $region11: #{tpu_custom_call.1} parent=5 // pred_region
        %s251 = ssub.s32 %s17, 1
        // Predicated region
        $region13: #{tpu_custom_call.1} parent=11 // pred_check
          %p252 = pneg %p78
        $region14: #{tpu_custom_call.1} parent=11 // pred_check_branch
          %254 = sbr.rel (%p252) target = $region16
        $region15: #{tpu_custom_call.1} parent=11 // pred_region
          _
        $region16: #{tpu_custom_call.1} parent=11 // pred_fallthru
          _
        // Predicated region
        $region17: #{tpu_custom_call.1} parent=11 // pred_check
          %p255 = pneg %p99
        $region18: #{tpu_custom_call.1} parent=11 // pred_check_branch
          %257 = sbr.rel (%p255) target = $region20
        $region19: #{tpu_custom_call.1} parent=11 // pred_region
          _
        $region20: #{tpu_custom_call.1} parent=11 // pred_fallthru
          _
      $region12: #{tpu_custom_call.1} parent=5 // pred_fallthru
        _
      %p258 = scmp.lt.s32.totalorder %s17, 2
      // Predicated region
      $region21: #{tpu_custom_call.1} parent=5 // pred_check
        %p259 = pneg %p258
      $region22: #{tpu_custom_call.1} parent=5 // pred_check_branch
        %261 = sbr.rel (%p259) target = $region24
      $region23: #{tpu_custom_call.1} parent=5 // pred_region
        // Predicated region
        $region25: #{tpu_custom_call.1} parent=23 // pred_check
          %p262 = pneg %p51
        $region26: #{tpu_custom_call.1} parent=23 // pred_check_branch
          %264 = sbr.rel (%p262) target = $region28
        $region27: #{tpu_custom_call.1} parent=23 // pred_region
          %s265 = smul.u32 2, %s25
          %p266 = scmp.lt.s32.totalorder %s24, 1
          %s267 = scalar_select %p266, %s24, 1
          %p268 = scmp.lt.s32.totalorder %s265, 1
          %s269 = scalar_select %p268, %s265, 1
          %s270 = smul.addr %s267, 2
          %s271 = sadd.s32 %s269, %s270
          %s272 = smul.addr %s271, 4
          %s273 = scalar_lea.vmem %s0, %s272
          %s274 = smul.u32 2, %s25
        $region28: #{tpu_custom_call.1} parent=23 // pred_fallthru
          _
        // Predicated region
        $region29: #{tpu_custom_call.1} parent=23 // pred_check
          %p275 = pneg %p121
        $region30: #{tpu_custom_call.1} parent=23 // pred_check_branch
          %277 = sbr.rel (%p275) target = $region32
        $region31: #{tpu_custom_call.1} parent=23 // pred_region
          %s278 = smul.u32 2, %s25
          %p279 = scmp.lt.s32.totalorder %s24, 1
          %s280 = scalar_select %p279, %s24, 1
          %p281 = scmp.lt.s32.totalorder %s278, 1
          %s282 = scalar_select %p281, %s278, 1
          %s283 = smul.addr %s280, 2
          %s284 = sadd.s32 %s282, %s283
          %s285 = smul.addr %s284, 4
          %s286 = scalar_lea.vmem %s3, %s285
          %s287 = smul.u32 2, %s25
        $region32: #{tpu_custom_call.1} parent=23 // pred_fallthru
          _
        // Predicated region
        $region33: #{tpu_custom_call.1} parent=23 // pred_check
          %p288 = pneg %p149
        $region34: #{tpu_custom_call.1} parent=23 // pred_check_branch
          %290 = sbr.rel (%p288) target = $region36
        $region35: #{tpu_custom_call.1} parent=23 // pred_region
          %s291 = smul.u32 2, %s25
          %p292 = scmp.lt.s32.totalorder %s24, 1
          %s293 = scalar_select %p292, %s24, 1
          %p294 = scmp.lt.s32.totalorder %s291, 1
          %s295 = scalar_select %p294, %s291, 1
          %s296 = smul.addr %s293, 4
          %s297 = sadd.s32 %s295, %s296
          %s298 = smul.addr %s297, 8
          %s299 = scalar_lea.vmem %s4, %s298
          %s300 = smul.u32 2, %s25
        $region36: #{tpu_custom_call.1} parent=23 // pred_fallthru
          _
      $region24: #{tpu_custom_call.1} parent=5 // pred_fallthru
        _
      %p301 = scmp.le.s32.totalorder 1, %s17
      %p302 = scmp.lt.s32.totalorder %s17, 3
      %p303 = pnand %p301, %p302
      %p304 = pneg %p303
      // Predicated region
      $region37: #{tpu_custom_call.1} parent=5 // pred_check
        _
      $region38: #{tpu_custom_call.1} parent=5 // pred_check_branch
        %306 = sbr.rel (%p303) target = $region40
      $region39: #{tpu_custom_call.1} parent=5 // pred_region
        %s307 = ssub.s32 %s17, 1
        %s308 = smul.u32 2, %s27
        %p309 = scmp.lt.s32.totalorder %s26, 1
        %s310 = scalar_select %p309, %s26, 1
        %p311 = scmp.lt.s32.totalorder %s308, 1
        %s312 = scalar_select %p311, %s308, 1
        %s313 = smul.addr %s310, 2
        %s314 = sadd.s32 %s312, %s313
        %s315 = smul.addr %s314, 4
        %s316 = scalar_lea.vmem %s0, %s315
        %p317 = pneg %p57
        %p318 = pneg %p54
        %p319 = pneg %p78
        %p320 = pneg %p75
        %p321 = pneg %p99
        %p322 = pneg %p96
        %s323 = smul.u32 2, %s27
        %p324 = scmp.lt.s32.totalorder %s26, 1
        %s325 = scalar_select %p324, %s26, 1
        %p326 = scmp.lt.s32.totalorder %s323, 1
        %s327 = scalar_select %p326, %s323, 1
        %s328 = smul.addr %s325, 2
        %s329 = sadd.s32 %s327, %s328
        %s330 = smul.addr %s329, 4
        %s331 = scalar_lea.vmem %s3, %s330
        %p332 = pneg %p127
        %p333 = pneg %p124
        %s334 = smul.u32 2, %s27
        %p335 = scmp.lt.s32.totalorder %s26, 1
        %s336 = scalar_select %p335, %s26, 1
        %p337 = scmp.lt.s32.totalorder %s334, 1
        %s338 = scalar_select %p337, %s334, 1
        %s339 = smul.addr %s336, 4
        %s340 = sadd.s32 %s338, %s339
        %s341 = smul.addr %s340, 8
        %s342 = scalar_lea.vmem %s4, %s341
        %p343 = pneg %p155
        %p344 = pneg %p152
        %p345 = pneg %p183
        %p346 = pneg %p180
        %s347 = smul.u32 2, %s27
        %p348 = scmp.lt.s32.totalorder %s26, 1
        %s349 = scalar_select %p348, %s26, 1
        %p350 = scmp.lt.s32.totalorder %s347, 1
        %s351 = scalar_select %p350, %s347, 1
        %s352 = smul.addr %s349, 26
        %s353 = sadd.s32 %s351, %s352
        %s354 = smul.addr %s353, 8
        %s355 = scalar_lea.vmem %s5, %s354
        %p356 = pneg %p211
        %p357 = pneg %p208
        %s358 = smul.u32 2, %s27
        %p359 = scmp.lt.s32.totalorder %s26, 1
        %s360 = scalar_select %p359, %s26, 1
        %p361 = scmp.lt.s32.totalorder %s358, 1
        %s362 = scalar_select %p361, %s358, 1
        %s363 = smul.addr %s360, 2
        %s364 = sadd.s32 %s362, %s363
        %s365 = smul.addr %s364, 4
        %s366 = scalar_lea.vmem %s6, %s365
        %p367 = pneg %p237
        %p368 = pneg %p234
        %s369 = sand.u32 %s224, 1
        %s370 = scalar_lea.sflag [#allocation3], %s369
        %s371 = sand.u32 %s224, 1
        %s372 = scalar_lea.vmem [#allocation2], %s371
        %s373 = smul.u32 2, %s27
        %p374 = scmp.lt.s32.totalorder %s26, 1
        %s375 = scalar_select %p374, %s26, 1
        %p376 = scmp.lt.s32.totalorder %s373, 1
        %s377 = scalar_select %p376, %s373, 1
        %s378 = smul.addr %s375, 2
        %s379 = sadd.s32 %s377, %s378
        %s380 = smul.addr %s379, 4
        %s381 = scalar_lea.vmem %s0, %s380
        %s382 = smul.u32 2, %s27
        %s383 = smul.u32 2, %s27
        %p384 = scmp.lt.s32.totalorder %s26, 1
        %s385 = scalar_select %p384, %s26, 1
        %p386 = scmp.lt.s32.totalorder %s383, 1
        %s387 = scalar_select %p386, %s383, 1
        %s388 = smul.addr %s385, 2
        %s389 = sadd.s32 %s387, %s388
        %s390 = smul.addr %s389, 4
        %s391 = scalar_lea.vmem %s3, %s390
        %s392 = smul.u32 2, %s27
        %s393 = smul.u32 2, %s27
        %p394 = scmp.lt.s32.totalorder %s26, 1
        %s395 = scalar_select %p394, %s26, 1
        %p396 = scmp.lt.s32.totalorder %s393, 1
        %s397 = scalar_select %p396, %s393, 1
        %s398 = smul.addr %s395, 4
        %s399 = sadd.s32 %s397, %s398
        %s400 = smul.addr %s399, 8
        %s401 = scalar_lea.vmem %s4, %s400
        %s402 = smul.u32 2, %s27
        %s403 = smul.u32 2, %s27
        %p404 = scmp.lt.s32.totalorder %s26, 1
        %s405 = scalar_select %p404, %s26, 1
        %p406 = scmp.lt.s32.totalorder %s403, 1
        %s407 = scalar_select %p406, %s403, 1
        %s408 = smul.addr %s405, 26
        %s409 = sadd.s32 %s407, %s408
        %s410 = smul.addr %s409, 8
        %s411 = scalar_lea.vmem %s5, %s410
        %s412 = smul.u32 2, %s27
        %s413 = smul.u32 2, %s27
        %p414 = scmp.lt.s32.totalorder %s26, 1
        %s415 = scalar_select %p414, %s26, 1
        %p416 = scmp.lt.s32.totalorder %s413, 1
        %s417 = scalar_select %p416, %s413, 1
        %s418 = smul.addr %s415, 2
        %s419 = sadd.s32 %s417, %s418
        %s420 = smul.addr %s419, 4
        %s421 = scalar_lea.vmem %s6, %s420
        %s422 = smul.u32 2, %s27
        %v423 = vld [vmem:[%s1] sm:$0xff]
        %v424 = vld [vmem:[%s1 + $0x8] sm:$0xff]
        %v425 = vld [vmem:[%s1 + $0x10] sm:$0xff]
        %v426 = vld [vmem:[%s1 + $0x18] sm:$0xff]
        %v427 = vld [vmem:[%s1 + $0x20] sm:$0xff]
        %v428 = vld [vmem:[%s1 + $0x28] sm:$0xff]
        %v429 = vld [vmem:[%s1 + $0x30] sm:$0xff]
        %v430 = vld [vmem:[%s1 + $0x38] sm:$0xff]
        %v431 = vld [vmem:[%s1 + $0x40] sm:$0xff]
        %v432 = vld [vmem:[%s1 + $0x48] sm:$0xff]
        %v433 = vld [vmem:[%s1 + $0x50] sm:$0xff]
        %v434 = vld [vmem:[%s1 + $0x58] sm:$0xff]
        %v435 = vld [vmem:[%s1 + $0x60] sm:$0xf]
        %v436 = vld [vmem:[%s381] sm:$0xff]
        %v437 = vld [vmem:[%s2] sm:$0xff]
        %v438 = vld [vmem:[%s2 + $0x8] sm:$0xff]
        %v439 = vld [vmem:[%s2 + $0x10] sm:$0xff]
        %v440 = vld [vmem:[%s2 + $0x18] sm:$0xff]
        %v441 = vld [vmem:[%s2 + $0x20] sm:$0xff]
        %v442 = vld [vmem:[%s2 + $0x28] sm:$0xff]
        %v443 = vld [vmem:[%s2 + $0x30] sm:$0xff]
        %v444 = vld [vmem:[%s2 + $0x38] sm:$0xff]
        %v445 = vld [vmem:[%s2 + $0x40] sm:$0xff]
        %v446 = vld [vmem:[%s2 + $0x48] sm:$0xff]
        %v447 = vld [vmem:[%s2 + $0x50] sm:$0xff]
        %v448 = vld [vmem:[%s2 + $0x58] sm:$0xff]
        %v449 = vld [vmem:[%s2 + $0x60] sm:$0xf]
        %451 = vset.pattern.permute.xlu0 0
        %452 = vperm.xlu0 %451, %v437
        %v453 = vpop.permute.xlu0 %452
        %456 = vset.pattern.permute.xlu0 0
        %457 = vperm.xlu0 %456, %v438
        %v458 = vpop.permute.xlu0 %457
        %461 = vset.pattern.permute.xlu0 0
        %462 = vperm.xlu0 %461, %v439
        %v463 = vpop.permute.xlu0 %462
        %466 = vset.pattern.permute.xlu0 0
        %467 = vperm.xlu0 %466, %v440
        %v468 = vpop.permute.xlu0 %467
        %471 = vset.pattern.permute.xlu0 0
        %472 = vperm.xlu0 %471, %v441
        %v473 = vpop.permute.xlu0 %472
        %476 = vset.pattern.permute.xlu0 0
        %477 = vperm.xlu0 %476, %v442
        %v478 = vpop.permute.xlu0 %477
        %481 = vset.pattern.permute.xlu0 0
        %482 = vperm.xlu0 %481, %v443
        %v483 = vpop.permute.xlu0 %482
        %486 = vset.pattern.permute.xlu0 0
        %487 = vperm.xlu0 %486, %v444
        %v488 = vpop.permute.xlu0 %487
        %491 = vset.pattern.permute.xlu0 0
        %492 = vperm.xlu0 %491, %v445
        %v493 = vpop.permute.xlu0 %492
        %496 = vset.pattern.permute.xlu0 0
        %497 = vperm.xlu0 %496, %v446
        %v498 = vpop.permute.xlu0 %497
        %501 = vset.pattern.permute.xlu0 0
        %502 = vperm.xlu0 %501, %v447
        %v503 = vpop.permute.xlu0 %502
        %506 = vset.pattern.permute.xlu0 0
        %507 = vperm.xlu0 %506, %v448
        %v508 = vpop.permute.xlu0 %507
        %511 = vset.pattern.permute.xlu0 0
        %512 = vperm.xlu0 %511, %v449
        %v513 = vpop.permute.xlu0 %512
        %516 = vst [vmem:[#allocation1] ss:$2 sm:$0xff] %v436
        %v517 = vld.sshfl [vmem:[#allocation1] sm:$0xff pattern:$0x75316420]
        %v518 = vld.sshfl [vmem:[#allocation1 + $0x8] sm:$0xff pattern:$0x75316420]
        %vm519 = vcmask 31744
        %v521 = vsel %vm519, %v423, 0
        %v524 = vsel %vm519, %v424, 0
        %v527 = vsel %vm519, %v425, 0
        %v530 = vsel %vm519, %v426, 0
        %v533 = vsel %vm519, %v427, 0
        %v536 = vsel %vm519, %v428, 0
        %v539 = vsel %vm519, %v429, 0
        %v542 = vsel %vm519, %v430, 0
        %v545 = vsel %vm519, %v431, 0
        %v548 = vsel %vm519, %v432, 0
        %v551 = vsel %vm519, %v433, 0
        %v554 = vsel %vm519, %v434, 0
        %v557 = vsel %vm519, %v435, 0
        %vm559 = vcmask 1043456
        %v560 = vsel %vm559, %v517, 0
        %v562 = vsel %vm559, %v518, 0
        %564 = vmatpush.msra.mxu0 0.0
        %565 = vmatpush.msra.mxu0 0.0
        %566 = vmatpush.msra.mxu0 0.0
        %567 = vmatpush.msra.mxu0 0.0
        %568 = vmatpush.msra.mxu0 0.0
        %569 = vmatpush.msra.mxu0 0.0
        %570 = vmatpush.msra.mxu0 0.0
        %571 = vmatpush.msra.mxu0 0.0
        %572 = vmatpush.msra.mxu0 0.0
        %573 = vmatpush.msra.mxu0 0.0
        %574 = vmatpush.msra.mxu0 0.0
        %575 = vmatpush.msra.mxu0 0.0
        %576 = vmatpush.msra.mxu0 0.0
        %577 = vmatpush.msra.mxu0 0.0
        %578 = vmatpush.msra.mxu0 0.0
        %579 = vmatpush.msra.mxu0 %v560
        %580 = vmatmul.f32.gmra.mxu0 %v521
        %v581 = vpop.f32.mrf.mxu0
        %v582 = vadd.f32 %v453, %v581
        %583 = vmatmul.f32.gmra.mxu0 %v524
        %v584 = vpop.f32.mrf.mxu0
        %v585 = vadd.f32 %v458, %v584
        %586 = vmatmul.f32.gmra.mxu0 %v527
        %v587 = vpop.f32.mrf.mxu0
        %v588 = vadd.f32 %v463, %v587
        %589 = vmatmul.f32.gmra.mxu0 %v530
        %v590 = vpop.f32.mrf.mxu0
        %v591 = vadd.f32 %v468, %v590
        %592 = vmatmul.f32.gmra.mxu0 %v533
        %v593 = vpop.f32.mrf.mxu0
        %v594 = vadd.f32 %v473, %v593
        %595 = vmatmul.f32.gmra.mxu0 %v536
        %v596 = vpop.f32.mrf.mxu0
        %v597 = vadd.f32 %v478, %v596
        %598 = vmatmul.f32.gmra.mxu0 %v539
        %v599 = vpop.f32.mrf.mxu0
        %v600 = vadd.f32 %v483, %v599
        %601 = vmatmul.f32.gmra.mxu0 %v542
        %v602 = vpop.f32.mrf.mxu0
        %v603 = vadd.f32 %v488, %v602
        %604 = vmatmul.f32.gmra.mxu0 %v545
        %v605 = vpop.f32.mrf.mxu0
        %v606 = vadd.f32 %v493, %v605
        %607 = vmatmul.f32.gmra.mxu0 %v548
        %v608 = vpop.f32.mrf.mxu0
        %v609 = vadd.f32 %v498, %v608
        %610 = vmatmul.f32.gmra.mxu0 %v551
        %v611 = vpop.f32.mrf.mxu0
        %v612 = vadd.f32 %v503, %v611
        %613 = vmatmul.f32.gmra.mxu0 %v554
        %v614 = vpop.f32.mrf.mxu0
        %v615 = vadd.f32 %v508, %v614
        %616 = vmatmul.f32.gmra.mxu0 %v557
        %v617 = vpop.f32.mrf.mxu0
        %v618 = vadd.f32 %v513, %v617
        %619 = vdwg.mxu0
        %620 = vmatpush.msra.mxu0 0.0
        %621 = vmatpush.msra.mxu0 0.0
        %622 = vmatpush.msra.mxu0 0.0
        %623 = vmatpush.msra.mxu0 0.0
        %624 = vmatpush.msra.mxu0 0.0
        %625 = vmatpush.msra.mxu0 0.0
        %626 = vmatpush.msra.mxu0 0.0
        %627 = vmatpush.msra.mxu0 0.0
        %628 = vmatpush.msra.mxu0 0.0
        %629 = vmatpush.msra.mxu0 0.0
        %630 = vmatpush.msra.mxu0 0.0
        %631 = vmatpush.msra.mxu0 0.0
        %632 = vmatpush.msra.mxu0 0.0
        %633 = vmatpush.msra.mxu0 0.0
        %634 = vmatpush.msra.mxu0 0.0
        %635 = vmatpush.msra.mxu0 %v562
        %636 = vmatmul.f32.gmra.mxu0 %v521
        %v637 = vpop.f32.mrf.mxu0
        %v638 = vadd.f32 %v453, %v637
        %639 = vmatmul.f32.gmra.mxu0 %v524
        %v640 = vpop.f32.mrf.mxu0
        %v641 = vadd.f32 %v458, %v640
        %642 = vmatmul.f32.gmra.mxu0 %v527
        %v643 = vpop.f32.mrf.mxu0
        %v644 = vadd.f32 %v463, %v643
        %645 = vmatmul.f32.gmra.mxu0 %v530
        %v646 = vpop.f32.mrf.mxu0
        %v647 = vadd.f32 %v468, %v646
        %648 = vmatmul.f32.gmra.mxu0 %v533
        %v649 = vpop.f32.mrf.mxu0
        %v650 = vadd.f32 %v473, %v649
        %651 = vmatmul.f32.gmra.mxu0 %v536
        %v652 = vpop.f32.mrf.mxu0
        %v653 = vadd.f32 %v478, %v652
        %654 = vmatmul.f32.gmra.mxu0 %v539
        %v655 = vpop.f32.mrf.mxu0
        %v656 = vadd.f32 %v483, %v655
        %657 = vmatmul.f32.gmra.mxu0 %v542
        %v658 = vpop.f32.mrf.mxu0
        %v659 = vadd.f32 %v488, %v658
        %660 = vmatmul.f32.gmra.mxu0 %v545
        %v661 = vpop.f32.mrf.mxu0
        %v662 = vadd.f32 %v493, %v661
        %663 = vmatmul.f32.gmra.mxu0 %v548
        %v664 = vpop.f32.mrf.mxu0
        %v665 = vadd.f32 %v498, %v664
        %666 = vmatmul.f32.gmra.mxu0 %v551
        %v667 = vpop.f32.mrf.mxu0
        %v668 = vadd.f32 %v503, %v667
        %669 = vmatmul.f32.gmra.mxu0 %v554
        %v670 = vpop.f32.mrf.mxu0
        %v671 = vadd.f32 %v508, %v670
        %672 = vmatmul.f32.gmra.mxu0 %v557
        %v673 = vpop.f32.mrf.mxu0
        %v674 = vadd.f32 %v513, %v673
        %675 = vdwg.mxu0
        %676 = vst [vmem:[%s411] sm:$0xff] %v582
        %677 = vst [vmem:[%s411 + $0x8] sm:$0xff] %v638
        %678 = vst [vmem:[%s411 + $0x10] sm:$0xff] %v585
        %679 = vst [vmem:[%s411 + $0x18] sm:$0xff] %v641
        %680 = vst [vmem:[%s411 + $0x20] sm:$0xff] %v588
        %681 = vst [vmem:[%s411 + $0x28] sm:$0xff] %v644
        %682 = vst [vmem:[%s411 + $0x30] sm:$0xff] %v591
        %683 = vst [vmem:[%s411 + $0x38] sm:$0xff] %v647
        %684 = vst [vmem:[%s411 + $0x40] sm:$0xff] %v594
        %685 = vst [vmem:[%s411 + $0x48] sm:$0xff] %v650
        %686 = vst [vmem:[%s411 + $0x50] sm:$0xff] %v597
        %687 = vst [vmem:[%s411 + $0x58] sm:$0xff] %v653
        %688 = vst [vmem:[%s411 + $0x60] sm:$0xff] %v600
        %689 = vst [vmem:[%s411 + $0x68] sm:$0xff] %v656
        %690 = vst [vmem:[%s411 + $0x70] sm:$0xff] %v603
        %691 = vst [vmem:[%s411 + $0x78] sm:$0xff] %v659
        %692 = vst [vmem:[%s411 + $0x80] sm:$0xff] %v606
        %693 = vst [vmem:[%s411 + $0x88] sm:$0xff] %v662
        %694 = vst [vmem:[%s411 + $0x90] sm:$0xff] %v609
        %695 = vst [vmem:[%s411 + $0x98] sm:$0xff] %v665
        %696 = vst [vmem:[%s411 + $0xa0] sm:$0xff] %v612
        %697 = vst [vmem:[%s411 + $0xa8] sm:$0xff] %v668
        %698 = vst [vmem:[%s411 + $0xb0] sm:$0xff] %v615
        %699 = vst [vmem:[%s411 + $0xb8] sm:$0xff] %v671
        %700 = vst [vmem:[%s411 + $0xc0] sm:$0xf] %v618
        %701 = vst [vmem:[%s411 + $0xc8] sm:$0xf] %v674
        %vm706 = vcmask 1045504
        %v707 = vrot.slane %v585, 2
        %v708 = vrot.slane %v588, 2
        %v709 = vsel %vm706, %v707, %v708
        %v710 = vrot.slane %v641, 2
        %v711 = vrot.slane %v644, 2
        %v712 = vsel %vm706, %v710, %v711
        %vm721 = vcmask 1041408
        %v722 = vrot.slane %v597, 6
        %v723 = vrot.slane %v653, 6
        %v724 = vrot.slane %v600, 6
        %v725 = vsel %vm721, %v722, %v724
        %v726 = vrot.slane %v656, 6
        %v727 = vsel %vm721, %v723, %v726
        %v736 = vrot.slane %v606, 2
        %v737 = vrot.slane %v609, 2
        %v738 = vsel %vm706, %v736, %v737
        %v739 = vrot.slane %v662, 2
        %v740 = vrot.slane %v665, 2
        %v741 = vsel %vm706, %v739, %v740
        %v746 = vsel %vm721, %v708, %v722
        %v747 = vsel %vm721, %v711, %v723
        %v748 = vsel %vm559, %v725, %v738
        %v749 = vsel %vm559, %v727, %v741
        %v752 = vrot.slane %v588, 4
        %v753 = vrot.slane %v591, 4
        %v754 = vsel %vm559, %v752, %v753
        %v755 = vrot.slane %v644, 4
        %v756 = vrot.slane %v647, 4
        %v757 = vsel %vm559, %v755, %v756
        %v766 = vrot.slane %v612, 4
        %v767 = vrot.slane %v668, 4
        %v768 = vrot.slane %v615, 4
        %v769 = vsel %vm559, %v766, %v768
        %v770 = vrot.slane %v671, 4
        %v771 = vsel %vm559, %v767, %v770
        %v776 = vsel %vm721, %v753, %v600
        %v777 = vsel %vm721, %v756, %v656
        %v778 = vsel %vm559, %v603, %v766
        %v779 = vsel %vm559, %v659, %v767
        %v780 = vmax.f32 %v754, -7.0
        %v781 = vmax.f32 %v757, -7.0
        %v782 = vmax.f32 %v776, -7.0
        %v783 = vmax.f32 %v777, -7.0
        %v784 = vmax.f32 %v778, -7.0
        %v785 = vmax.f32 %v779, -7.0
        %v786 = vmax.f32 %v769, -7.0
        %v787 = vmax.f32 %v771, -7.0
        %v790 = vrot.slane %v591, 6
        %v791 = vrot.slane %v594, 6
        %v792 = vsel %vm721, %v790, %v791
        %v793 = vrot.slane %v647, 6
        %v794 = vrot.slane %v650, 6
        %v795 = vsel %vm721, %v793, %v794
        %v802 = vrot.slane %v603, 2
        %v803 = vsel %vm706, %v802, %v736
        %v804 = vrot.slane %v659, 2
        %v805 = vsel %vm706, %v804, %v739
        %v812 = vrot.slane %v615, 6
        %v813 = vrot.slane %v671, 6
        %v814 = vrot.slane %v618, 6
        %v815 = vsel %vm721, %v812, %v814
        %v816 = vrot.slane %v674, 6
        %v817 = vsel %vm721, %v813, %v816
        %v822 = vsel %vm721, %v791, %v803
        %v823 = vsel %vm721, %v794, %v805
        %v824 = vsel %vm559, %v736, %v812
        %v825 = vsel %vm559, %v739, %v813
        %v826 = vtanh.pop %v792
        %v827 = vtanh.pop %v795
        %v828 = vtanh.pop %v822
        %v829 = vtanh.pop %v823
        %v830 = vtanh.pop %v824
        %v831 = vtanh.pop %v825
        %v832 = vtanh.pop %v815
        %v833 = vtanh.pop %v817
        %v834 = vld [vmem:[%s401] sm:$0xff]
        %v835 = vld [vmem:[%s401 + $0x8] sm:$0xff]
        %v836 = vld [vmem:[%s401 + $0x10] sm:$0x1f]
        %v837 = vld [vmem:[%s401 + $0x18] sm:$0x1f]
        %v838 = vadd.f32 %v582, %v834
        %v839 = vadd.f32 %v638, %v835
        %v840 = vadd.f32 %v585, %v836
        %v841 = vadd.f32 %v641, %v837
        %v842 = vsel %vm721, %v840, -inf
        %v843 = vmax.f32 %v838, %v842
        %v844 = vrot.slane %v843, 4
        %v845 = vmax.f32 %v843, %v844
        %v846 = vrot.slane %v845, 2
        %v847 = vmax.f32 %v845, %v846
        %v848 = vrot.slane %v847, 1
        %v849 = vmax.f32 %v847, %v848
        %v850 = vsel %vm721, %v841, -inf
        %v851 = vmax.f32 %v839, %v850
        %v852 = vrot.slane %v851, 4
        %v853 = vmax.f32 %v851, %v852
        %v854 = vrot.slane %v853, 2
        %v855 = vmax.f32 %v853, %v854
        %v856 = vrot.slane %v855, 1
        %v857 = vmax.f32 %v855, %v856
        %v858 = vlaneseq
        %v859 = vshrl.u32 %v858, 7
        %v860 = vadd.s32 %v859, 8
        %v861 = vcvt.s32.f32 %v859
        %v862 = vcvt.s32.f32 %v860
        %vm863 = vcmp.eq.f32.partialorder %v838, %v849
        %vm864 = vcmp.eq.f32.partialorder %v839, %v857
        %vm865 = vcmp.eq.f32.partialorder %v840, %v849
        %vm866 = vcmp.eq.f32.partialorder %v841, %v857
        %v867 = vsel %vm863, %v861, 10.0
        %v868 = vsel %vm864, %v861, 10.0
        %v869 = vsel %vm865, %v862, 10.0
        %v870 = vsel %vm866, %v862, 10.0
        %v871 = vsel %vm721, %v869, inf
        %v872 = vmin.f32 %v867, %v871
        %v873 = vrot.slane %v872, 4
        %v874 = vmin.f32 %v872, %v873
        %v875 = vrot.slane %v874, 2
        %v876 = vmin.f32 %v874, %v875
        %v877 = vrot.slane %v876, 1
        %v878 = vmin.f32 %v876, %v877
        %v879 = vsel %vm721, %v870, inf
        %v880 = vmin.f32 %v868, %v879
        %v881 = vrot.slane %v880, 4
        %v882 = vmin.f32 %v880, %v881
        %v883 = vrot.slane %v882, 2
        %v884 = vmin.f32 %v882, %v883
        %v885 = vrot.slane %v884, 1
        %v886 = vmin.f32 %v884, %v885
        %vm887 = vcmp.eq.f32.partialorder %v861, %v878
        %vm888 = vcmp.eq.f32.partialorder %v861, %v886
        %vm889 = vcmp.eq.f32.partialorder %v862, %v878
        %vm890 = vcmp.eq.f32.partialorder %v862, %v886
        %v891 = vsel %vm887, 1, 0
        %v892 = vsel %vm888, 1, 0
        %v893 = vsel %vm889, 1, 0
        %v894 = vsel %vm890, 1, 0
        %v895 = vcvt.s32.f32 %v891
        %v896 = vcvt.s32.f32 %v892
        %v897 = vcvt.s32.f32 %v893
        %v898 = vcvt.s32.f32 %v894
        %v899 = vmul.f32 %v709, %v895
        %v900 = vmul.f32 %v712, %v896
        %v901 = vmul.f32 %v746, %v897
        %v902 = vmul.f32 %v747, %v898
        %v903 = vsel %vm721, %v901, 0.0
        %v904 = vadd.f32 %v899, %v903
        %v905 = vrot.slane %v904, 4
        %v906 = vadd.f32 %v904, %v905
        %v907 = vrot.slane %v906, 2
        %v908 = vadd.f32 %v906, %v907
        %v909 = vrot.slane %v908, 1
        %v910 = vadd.f32 %v908, %v909
        %v911 = vsel %vm721, %v902, 0.0
        %v912 = vadd.f32 %v900, %v911
        %v913 = vrot.slane %v912, 4
        %v914 = vadd.f32 %v912, %v913
        %v915 = vrot.slane %v914, 2
        %v916 = vadd.f32 %v914, %v915
        %v917 = vrot.slane %v916, 1
        %v918 = vadd.f32 %v916, %v917
        %v923 = vrot.slane %v895, 6
        %v924 = vrot.slane %v896, 6
        %v925 = vrot.slane %v897, 6
        %v926 = vsel %vm721, %v923, %v925
        %v927 = vrot.slane %v898, 6
        %v928 = vsel %vm721, %v924, %v927
        %v933 = vmul.f32 %v746, %v923
        %v934 = vmul.f32 %v747, %v924
        %v935 = vmul.f32 %v748, %v926
        %v936 = vmul.f32 %v749, %v928
        %v941 = vrot.slane %v933, 2
        %v942 = vrot.slane %v935, 2
        %v943 = vsel %vm706, %v941, %v942
        %v944 = vrot.slane %v934, 2
        %v945 = vrot.slane %v936, 2
        %v946 = vsel %vm706, %v944, %v945
        %v951 = vsel %vm721, %v942, 0.0
        %v952 = vadd.f32 %v943, %v951
        %v953 = vrot.slane %v952, 4
        %v954 = vadd.f32 %v952, %v953
        %v955 = vrot.slane %v954, 2
        %v956 = vadd.f32 %v954, %v955
        %v957 = vrot.slane %v956, 1
        %v958 = vadd.f32 %v956, %v957
        %v959 = vsel %vm721, %v945, 0.0
        %v960 = vadd.f32 %v946, %v959
        %v961 = vrot.slane %v960, 4
        %v962 = vadd.f32 %v960, %v961
        %v963 = vrot.slane %v962, 2
        %v964 = vadd.f32 %v962, %v963
        %v965 = vrot.slane %v964, 1
        %v966 = vadd.f32 %v964, %v965
        %v967 = vrot.slane %v895, 4
        %v968 = vrot.slane %v896, 4
        %v969 = vrot.slane %v897, 4
        %v970 = vsel %vm559, %v967, %v969
        %v971 = vrot.slane %v898, 4
        %v972 = vsel %vm559, %v968, %v971
        %v977 = vmul.f32 %v748, %v967
        %v978 = vmul.f32 %v749, %v968
        %v979 = vmul.f32 %v737, %v970
        %v980 = vmul.f32 %v740, %v972
        %v985 = vrot.slane %v977, 4
        %v986 = vrot.slane %v979, 4
        %v987 = vsel %vm559, %v985, %v986
        %v988 = vrot.slane %v978, 4
        %v989 = vrot.slane %v980, 4
        %v990 = vsel %vm559, %v988, %v989
        %v995 = vsel %vm721, %v986, 0.0
        %v996 = vadd.f32 %v987, %v995
        %v997 = vrot.slane %v996, 4
        %v998 = vadd.f32 %v996, %v997
        %v999 = vrot.slane %v998, 2
        %v1000 = vadd.f32 %v998, %v999
        %v1001 = vrot.slane %v1000, 1
        %v1002 = vadd.f32 %v1000, %v1001
        %v1003 = vsel %vm721, %v989, 0.0
        %v1004 = vadd.f32 %v990, %v1003
        %v1005 = vrot.slane %v1004, 4
        %v1006 = vadd.f32 %v1004, %v1005
        %v1007 = vrot.slane %v1006, 2
        %v1008 = vadd.f32 %v1006, %v1007
        %v1009 = vrot.slane %v1008, 1
        %v1010 = vadd.f32 %v1008, %v1009
        %vm1011 = vcmask 1040384
        %v1012 = vsel %vm1011, %v910, %v958
        %v1013 = vsel %vm1011, %v918, %v966
        %v1014 = vsel %vm721, %v1012, %v1002
        %v1015 = vsel %vm721, %v1013, %v1010
        %v1016 = vmul.f32 %v780, %v895
        %v1017 = vmul.f32 %v781, %v896
        %v1018 = vmul.f32 %v782, %v897
        %v1019 = vmul.f32 %v783, %v898
        %v1020 = vsel %vm721, %v1018, 0.0
        %v1021 = vadd.f32 %v1016, %v1020
        %v1022 = vrot.slane %v1021, 4
        %v1023 = vadd.f32 %v1021, %v1022
        %v1024 = vrot.slane %v1023, 2
        %v1025 = vadd.f32 %v1023, %v1024
        %v1026 = vrot.slane %v1025, 1
        %v1027 = vadd.f32 %v1025, %v1026
        %v1028 = vsel %vm721, %v1019, 0.0
        %v1029 = vadd.f32 %v1017, %v1028
        %v1030 = vrot.slane %v1029, 4
        %v1031 = vadd.f32 %v1029, %v1030
        %v1032 = vrot.slane %v1031, 2
        %v1033 = vadd.f32 %v1031, %v1032
        %v1034 = vrot.slane %v1033, 1
        %v1035 = vadd.f32 %v1033, %v1034
        %v1036 = vmul.f32 %v782, %v923
        %v1037 = vmul.f32 %v783, %v924
        %v1038 = vmul.f32 %v784, %v926
        %v1039 = vmul.f32 %v785, %v928
        %v1044 = vrot.slane %v1036, 2
        %v1045 = vrot.slane %v1038, 2
        %v1046 = vsel %vm706, %v1044, %v1045
        %v1047 = vrot.slane %v1037, 2
        %v1048 = vrot.slane %v1039, 2
        %v1049 = vsel %vm706, %v1047, %v1048
        %v1054 = vsel %vm721, %v1045, 0.0
        %v1055 = vadd.f32 %v1046, %v1054
        %v1056 = vrot.slane %v1055, 4
        %v1057 = vadd.f32 %v1055, %v1056
        %v1058 = vrot.slane %v1057, 2
        %v1059 = vadd.f32 %v1057, %v1058
        %v1060 = vrot.slane %v1059, 1
        %v1061 = vadd.f32 %v1059, %v1060
        %v1062 = vsel %vm721, %v1048, 0.0
        %v1063 = vadd.f32 %v1049, %v1062
        %v1064 = vrot.slane %v1063, 4
        %v1065 = vadd.f32 %v1063, %v1064
        %v1066 = vrot.slane %v1065, 2
        %v1067 = vadd.f32 %v1065, %v1066
        %v1068 = vrot.slane %v1067, 1
        %v1069 = vadd.f32 %v1067, %v1068
        %v1070 = vmul.f32 %v784, %v967
        %v1071 = vmul.f32 %v785, %v968
        %v1072 = vmul.f32 %v786, %v970
        %v1073 = vmul.f32 %v787, %v972
        %v1078 = vrot.slane %v1070, 4
        %v1079 = vrot.slane %v1072, 4
        %v1080 = vsel %vm559, %v1078, %v1079
        %v1081 = vrot.slane %v1071, 4
        %v1082 = vrot.slane %v1073, 4
        %v1083 = vsel %vm559, %v1081, %v1082
        %v1088 = vsel %vm721, %v1079, 0.0
        %v1089 = vadd.f32 %v1080, %v1088
        %v1090 = vrot.slane %v1089, 4
        %v1091 = vadd.f32 %v1089, %v1090
        %v1092 = vrot.slane %v1091, 2
        %v1093 = vadd.f32 %v1091, %v1092
        %v1094 = vrot.slane %v1093, 1
        %v1095 = vadd.f32 %v1093, %v1094
        %v1096 = vsel %vm721, %v1082, 0.0
        %v1097 = vadd.f32 %v1083, %v1096
        %v1098 = vrot.slane %v1097, 4
        %v1099 = vadd.f32 %v1097, %v1098
        %v1100 = vrot.slane %v1099, 2
        %v1101 = vadd.f32 %v1099, %v1100
        %v1102 = vrot.slane %v1101, 1
        %v1103 = vadd.f32 %v1101, %v1102
        %v1104 = vsel %vm1011, %v1027, %v1061
        %v1105 = vsel %vm1011, %v1035, %v1069
        %v1106 = vsel %vm721, %v1104, %v1095
        %v1107 = vsel %vm721, %v1105, %v1103
        %v1108 = vmul.f32 %v826, %v895
        %v1109 = vmul.f32 %v827, %v896
        %v1110 = vmul.f32 %v828, %v897
        %v1111 = vmul.f32 %v829, %v898
        %v1112 = vsel %vm721, %v1110, 0.0
        %v1113 = vadd.f32 %v1108, %v1112
        %v1114 = vrot.slane %v1113, 4
        %v1115 = vadd.f32 %v1113, %v1114
        %v1116 = vrot.slane %v1115, 2
        %v1117 = vadd.f32 %v1115, %v1116
        %v1118 = vrot.slane %v1117, 1
        %v1119 = vadd.f32 %v1117, %v1118
        %v1120 = vsel %vm721, %v1111, 0.0
        %v1121 = vadd.f32 %v1109, %v1120
        %v1122 = vrot.slane %v1121, 4
        %v1123 = vadd.f32 %v1121, %v1122
        %v1124 = vrot.slane %v1123, 2
        %v1125 = vadd.f32 %v1123, %v1124
        %v1126 = vrot.slane %v1125, 1
        %v1127 = vadd.f32 %v1125, %v1126
        %v1128 = vmul.f32 %v828, %v923
        %v1129 = vmul.f32 %v829, %v924
        %v1130 = vmul.f32 %v830, %v926
        %v1131 = vmul.f32 %v831, %v928
        %v1136 = vrot.slane %v1128, 2
        %v1137 = vrot.slane %v1130, 2
        %v1138 = vsel %vm706, %v1136, %v1137
        %v1139 = vrot.slane %v1129, 2
        %v1140 = vrot.slane %v1131, 2
        %v1141 = vsel %vm706, %v1139, %v1140
        %v1146 = vsel %vm721, %v1137, 0.0
        %v1147 = vadd.f32 %v1138, %v1146
        %v1148 = vrot.slane %v1147, 4
        %v1149 = vadd.f32 %v1147, %v1148
        %v1150 = vrot.slane %v1149, 2
        %v1151 = vadd.f32 %v1149, %v1150
        %v1152 = vrot.slane %v1151, 1
        %v1153 = vadd.f32 %v1151, %v1152
        %v1154 = vsel %vm721, %v1140, 0.0
        %v1155 = vadd.f32 %v1141, %v1154
        %v1156 = vrot.slane %v1155, 4
        %v1157 = vadd.f32 %v1155, %v1156
        %v1158 = vrot.slane %v1157, 2
        %v1159 = vadd.f32 %v1157, %v1158
        %v1160 = vrot.slane %v1159, 1
        %v1161 = vadd.f32 %v1159, %v1160
        %v1162 = vmul.f32 %v830, %v967
        %v1163 = vmul.f32 %v831, %v968
        %v1164 = vmul.f32 %v832, %v970
        %v1165 = vmul.f32 %v833, %v972
        %v1170 = vrot.slane %v1162, 4
        %v1171 = vrot.slane %v1164, 4
        %v1172 = vsel %vm559, %v1170, %v1171
        %v1173 = vrot.slane %v1163, 4
        %v1174 = vrot.slane %v1165, 4
        %v1175 = vsel %vm559, %v1173, %v1174
        %v1180 = vsel %vm721, %v1171, 0.0
        %v1181 = vadd.f32 %v1172, %v1180
        %v1182 = vrot.slane %v1181, 4
        %v1183 = vadd.f32 %v1181, %v1182
        %v1184 = vrot.slane %v1183, 2
        %v1185 = vadd.f32 %v1183, %v1184
        %v1186 = vrot.slane %v1185, 1
        %v1187 = vadd.f32 %v1185, %v1186
        %v1188 = vsel %vm721, %v1174, 0.0
        %v1189 = vadd.f32 %v1175, %v1188
        %v1190 = vrot.slane %v1189, 4
        %v1191 = vadd.f32 %v1189, %v1190
        %v1192 = vrot.slane %v1191, 2
        %v1193 = vadd.f32 %v1191, %v1192
        %v1194 = vrot.slane %v1193, 1
        %v1195 = vadd.f32 %v1193, %v1194
        %v1196 = vsel %vm1011, %v1119, %v1153
        %v1197 = vsel %vm1011, %v1127, %v1161
        %v1198 = vsel %vm721, %v1196, %v1187
        %v1199 = vsel %vm721, %v1197, %v1195
        %v1200 = vmul.f32 %v1106, 1.442695
        %v1201 = vpow.pop %v1200
        %v1202 = vmul.f32 %v1107, 1.442695
        %v1203 = vpow.pop %v1202
        %v1206 = vrot.slane %v836, 2
        %v1207 = vrot.slane %v837, 2
        %v1210 = vmul.f32 %v1201, %v1206
        %v1211 = vmul.f32 %v1203, %v1207
        %v1212 = vadd.f32 %v1014, %v1210
        %v1213 = vadd.f32 %v1015, %v1211
        %v1214 = vmax.f32 %v1212, -1.0
        %v1215 = vmax.f32 %v1213, -1.0
        %v1216 = vmin.f32 %v1214, 1.0
        %v1217 = vmin.f32 %v1215, 1.0
        %v1218 = vmul.f32 %v1198, %v1216
        %v1219 = vmul.f32 %v1199, %v1217
        %v1222 = vrot.slane %v1218, 7
        %v1223 = vrot.slane %v1219, 7
        %v1226 = vadd.f32 %v1212, %v1222
        %v1227 = vadd.f32 %v1213, %v1223
        %v1228 = vmax.f32 %v1226, -1.0
        %v1229 = vmax.f32 %v1227, -1.0
        %v1230 = vmin.f32 %v1228, 1.0
        %v1231 = vmin.f32 %v1229, 1.0
        %v1234 = vrot.slane %v1216, 7
        %v1235 = vrot.slane %v1217, 7
        %v1238 = vmul.f32 %v1198, %v1234
        %v1239 = vmul.f32 %v1199, %v1235
        %v1242 = vrot.slane %v1238, 7
        %v1243 = vrot.slane %v1239, 7
        %v1246 = vadd.f32 %v1212, %v1242
        %v1247 = vadd.f32 %v1213, %v1243
        %v1250 = vrot.slane %v1230, 7
        %v1251 = vrot.slane %v1231, 7
        %v1254 = vmul.f32 %v1198, %v1250
        %v1255 = vmul.f32 %v1199, %v1251
        %v1256 = vadd.f32 %v1246, %v1254
        %v1257 = vadd.f32 %v1247, %v1255
        %v1258 = vmax.f32 %v1256, -1.0
        %v1259 = vmax.f32 %v1257, -1.0
        %v1260 = vmin.f32 %v1258, 1.0
        %v1261 = vmin.f32 %v1259, 1.0
        %v1262 = vsel %vm1011, %v1216, %v1230
        %v1263 = vsel %vm1011, %v1217, %v1231
        %v1264 = vsel %vm721, %v1262, %v1260
        %v1265 = vsel %vm721, %v1263, %v1261
        %v1266 = vadd.f32 %v1264, 1.0
        %v1267 = vadd.f32 %v1265, 1.0
        %v1268 = vmul.f32 %v1266, 0.5
        %v1269 = vmul.f32 %v1267, 0.5
        %v1270 = vmax.f32 %v1268, 0.0
        %v1271 = vmax.f32 %v1269, 0.0
        %v1272 = vmin.f32 %v1270, 1.0
        %v1273 = vmin.f32 %v1271, 1.0
        %v1276 = vrot.slane %v1273, 4
        %v1277 = vsel %vm559, %v1272, %v1276
        %1279 = vst [vmem:[%s421] sm:$0x77] %v1277
        %v1280 = vld [vmem:[%s391] sm:$0x77]
        %v1282 = vperm.slane %v1280, 0
        %v1283 = vperm.slane %v1280, 4
        %v1286 = vperm.slane %v1282, 0
        %v1287 = vperm.slane %v1283, 0
        %v1288 = vmul.f32 %v826, %v1286
        %v1289 = vmul.f32 %v827, %v1287
        %v1290 = vmul.f32 %v828, %v1286
        %v1291 = vmul.f32 %v829, %v1287
        %v1296 = vrot.slane %v1288, 6
        %v1297 = vrot.slane %v1289, 6
        %v1298 = vrot.slane %v1290, 6
        %v1299 = vsel %vm721, %v1296, %v1298
        %v1300 = vrot.slane %v1291, 6
        %v1301 = vsel %vm721, %v1297, %v1300
        %v1306 = vadd.f32 %v746, %v1296
        %v1307 = vadd.f32 %v747, %v1297
        %v1308 = vadd.f32 %v748, %v1299
        %v1309 = vadd.f32 %v749, %v1301
        %v1310 = vmul.f32 %v830, %v1286
        %v1311 = vmul.f32 %v831, %v1287
        %v1314 = vrot.slane %v1310, 6
        %v1315 = vsel %vm721, %v1298, %v1314
        %v1316 = vrot.slane %v1311, 6
        %v1317 = vsel %vm721, %v1300, %v1316
        %v1322 = vadd.f32 %v748, %v1298
        %v1323 = vadd.f32 %v749, %v1300
        %v1324 = vadd.f32 %v737, %v1315
        %v1325 = vadd.f32 %v740, %v1317
        %v1326 = vperm.slane %v1280, 1
        %v1327 = vperm.slane %v1280, 5
        %v1330 = vperm.slane %v1326, 1
        %v1331 = vperm.slane %v1327, 1
        %v1332 = vmul.f32 %v830, %v1330
        %v1333 = vmul.f32 %v831, %v1331
        %v1334 = vmul.f32 %v832, %v1330
        %v1335 = vmul.f32 %v833, %v1331
        %v1336 = vadd.f32 %v1322, %v1332
        %v1337 = vadd.f32 %v1323, %v1333
        %v1338 = vadd.f32 %v1324, %v1334
        %v1339 = vadd.f32 %v1325, %v1335
        %v1340 = vsel %vm721, %v746, %v1306
        %v1341 = vsel %vm721, %v747, %v1307
        %v1342 = vsel %vm559, %v1308, %v1336
        %v1343 = vsel %vm559, %v1309, %v1337
        %v1344 = vperm.slane %v1280, 2
        %v1345 = vperm.slane %v1280, 6
        %v1348 = vperm.slane %v1344, 2
        %v1349 = vperm.slane %v1345, 2
        %v1350 = vsel %vm721, %v1286, %v1330
        %v1351 = vsel %vm721, %v1287, %v1331
        %v1352 = vsel %vm559, %v1330, %v1348
        %v1353 = vsel %vm559, %v1331, %v1349
        %v1354 = vsub.f32 %v1286, %v709
        %v1355 = vsub.f32 %v1287, %v712
        %v1356 = vsub.f32 %v1350, %v1340
        %v1357 = vsub.f32 %v1351, %v1341
        %v1358 = vsub.f32 %v1352, %v1342
        %v1359 = vsub.f32 %v1353, %v1343
        %v1360 = vsub.f32 %v1348, %v1338
        %v1361 = vsub.f32 %v1349, %v1339
        %v1362 = vsub.f32 0.0, %v780
        %v1363 = vsub.f32 0.0, %v781
        %v1364 = vsub.f32 0.0, %v782
        %v1365 = vsub.f32 0.0, %v783
        %v1366 = vsub.f32 0.0, %v784
        %v1367 = vsub.f32 0.0, %v785
        %v1368 = vsub.f32 0.0, %v786
        %v1369 = vsub.f32 0.0, %v787
        %v1370 = vmul.f32 %v1362, 1.442695
        %v1371 = vpow.pop %v1370
        %v1372 = vmul.f32 %v1363, 1.442695
        %v1373 = vpow.pop %v1372
        %v1374 = vmul.f32 %v1364, 1.442695
        %v1375 = vpow.pop %v1374
        %v1376 = vmul.f32 %v1365, 1.442695
        %v1377 = vpow.pop %v1376
        %v1378 = vmul.f32 %v1366, 1.442695
        %v1379 = vpow.pop %v1378
        %v1380 = vmul.f32 %v1367, 1.442695
        %v1381 = vpow.pop %v1380
        %v1382 = vmul.f32 %v1368, 1.442695
        %v1383 = vpow.pop %v1382
        %v1384 = vmul.f32 %v1369, 1.442695
        %v1385 = vpow.pop %v1384
        %v1386 = vadd.f32 %v1354, 0.003921569
        %v1387 = vadd.f32 %v1355, 0.003921569
        %v1388 = vadd.f32 %v1356, 0.003921569
        %v1389 = vadd.f32 %v1357, 0.003921569
        %v1390 = vadd.f32 %v1358, 0.003921569
        %v1391 = vadd.f32 %v1359, 0.003921569
        %v1392 = vadd.f32 %v1360, 0.003921569
        %v1393 = vadd.f32 %v1361, 0.003921569
        %v1394 = vmul.f32 %v1371, %v1386
        %v1395 = vmul.f32 %v1373, %v1387
        %v1396 = vmul.f32 %v1375, %v1388
        %v1397 = vmul.f32 %v1377, %v1389
        %v1398 = vmul.f32 %v1379, %v1390
        %v1399 = vmul.f32 %v1381, %v1391
        %v1400 = vmul.f32 %v1383, %v1392
        %v1401 = vmul.f32 %v1385, %v1393
        %v1402 = vsub.f32 %v1354, 0.003921569
        %v1403 = vsub.f32 %v1355, 0.003921569
        %v1404 = vsub.f32 %v1356, 0.003921569
        %v1405 = vsub.f32 %v1357, 0.003921569
        %v1406 = vsub.f32 %v1358, 0.003921569
        %v1407 = vsub.f32 %v1359, 0.003921569
        %v1408 = vsub.f32 %v1360, 0.003921569
        %v1409 = vsub.f32 %v1361, 0.003921569
        %v1410 = vmul.f32 %v1371, %v1402
        %v1411 = vmul.f32 %v1373, %v1403
        %v1412 = vmul.f32 %v1375, %v1404
        %v1413 = vmul.f32 %v1377, %v1405
        %v1414 = vmul.f32 %v1379, %v1406
        %v1415 = vmul.f32 %v1381, %v1407
        %v1416 = vmul.f32 %v1383, %v1408
        %v1417 = vmul.f32 %v1385, %v1409
        %v1418 = vmax.f32 %v1394, 0.0
        %v1419 = vmax.f32 %v1395, 0.0
        %v1420 = vmax.f32 %v1396, 0.0
        %v1421 = vmax.f32 %v1397, 0.0
        %v1422 = vmax.f32 %v1398, 0.0
        %v1423 = vmax.f32 %v1399, 0.0
        %v1424 = vmax.f32 %v1400, 0.0
        %v1425 = vmax.f32 %v1401, 0.0
        %v1426 = vand.u32 2147483647, %v1394
        %v1427 = vand.u32 2147483647, %v1395
        %v1428 = vand.u32 2147483647, %v1396
        %v1429 = vand.u32 2147483647, %v1397
        %v1430 = vand.u32 2147483647, %v1398
        %v1431 = vand.u32 2147483647, %v1399
        %v1432 = vand.u32 2147483647, %v1400
        %v1433 = vand.u32 2147483647, %v1401
        %v1434 = vsub.f32 0.0, %v1426
        %v1435 = vsub.f32 0.0, %v1427
        %v1436 = vsub.f32 0.0, %v1428
        %v1437 = vsub.f32 0.0, %v1429
        %v1438 = vsub.f32 0.0, %v1430
        %v1439 = vsub.f32 0.0, %v1431
        %v1440 = vsub.f32 0.0, %v1432
        %v1441 = vsub.f32 0.0, %v1433
        %v1442 = vmul.f32 %v1434, 1.442695
        %v1443 = vpow.pop %v1442
        %v1444 = vmul.f32 %v1435, 1.442695
        %v1445 = vpow.pop %v1444
        %v1446 = vmul.f32 %v1436, 1.442695
        %v1447 = vpow.pop %v1446
        %v1448 = vmul.f32 %v1437, 1.442695
        %v1449 = vpow.pop %v1448
        %v1450 = vmul.f32 %v1438, 1.442695
        %v1451 = vpow.pop %v1450
        %v1452 = vmul.f32 %v1439, 1.442695
        %v1453 = vpow.pop %v1452
        %v1454 = vmul.f32 %v1440, 1.442695
        %v1455 = vpow.pop %v1454
        %v1456 = vmul.f32 %v1441, 1.442695
        %v1457 = vpow.pop %v1456
        %v1458 = vadd.f32 %v1443, 1.0
        %v1459 = vadd.f32 %v1445, 1.0
        %v1460 = vadd.f32 %v1447, 1.0
        %v1461 = vadd.f32 %v1449, 1.0
        %v1462 = vadd.f32 %v1451, 1.0
        %v1463 = vadd.f32 %v1453, 1.0
        %v1464 = vadd.f32 %v1455, 1.0
        %v1465 = vadd.f32 %v1457, 1.0
        %v1466 = vlog2.pop %v1458
        %v1467 = vmul.f32 %v1466, 0.6931472
        %v1468 = vlog2.pop %v1459
        %v1469 = vmul.f32 %v1468, 0.6931472
        %v1470 = vlog2.pop %v1460
        %v1471 = vmul.f32 %v1470, 0.6931472
        %v1472 = vlog2.pop %v1461
        %v1473 = vmul.f32 %v1472, 0.6931472
        %v1474 = vlog2.pop %v1462
        %v1475 = vmul.f32 %v1474, 0.6931472
        %v1476 = vlog2.pop %v1463
        %v1477 = vmul.f32 %v1476, 0.6931472
        %v1478 = vlog2.pop %v1464
        %v1479 = vmul.f32 %v1478, 0.6931472
        %v1480 = vlog2.pop %v1465
        %v1481 = vmul.f32 %v1480, 0.6931472
        %v1482 = vadd.f32 %v1418, %v1467
        %v1483 = vadd.f32 %v1419, %v1469
        %v1484 = vadd.f32 %v1420, %v1471
        %v1485 = vadd.f32 %v1421, %v1473
        %v1486 = vadd.f32 %v1422, %v1475
        %v1487 = vadd.f32 %v1423, %v1477
        %v1488 = vadd.f32 %v1424, %v1479
        %v1489 = vadd.f32 %v1425, %v1481
        %v1490 = vmax.f32 %v1410, 0.0
        %v1491 = vmax.f32 %v1411, 0.0
        %v1492 = vmax.f32 %v1412, 0.0
        %v1493 = vmax.f32 %v1413, 0.0
        %v1494 = vmax.f32 %v1414, 0.0
        %v1495 = vmax.f32 %v1415, 0.0
        %v1496 = vmax.f32 %v1416, 0.0
        %v1497 = vmax.f32 %v1417, 0.0
        %v1498 = vand.u32 2147483647, %v1410
        %v1499 = vand.u32 2147483647, %v1411
        %v1500 = vand.u32 2147483647, %v1412
        %v1501 = vand.u32 2147483647, %v1413
        %v1502 = vand.u32 2147483647, %v1414
        %v1503 = vand.u32 2147483647, %v1415
        %v1504 = vand.u32 2147483647, %v1416
        %v1505 = vand.u32 2147483647, %v1417
        %v1506 = vsub.f32 0.0, %v1498
        %v1507 = vsub.f32 0.0, %v1499
        %v1508 = vsub.f32 0.0, %v1500
        %v1509 = vsub.f32 0.0, %v1501
        %v1510 = vsub.f32 0.0, %v1502
        %v1511 = vsub.f32 0.0, %v1503
        %v1512 = vsub.f32 0.0, %v1504
        %v1513 = vsub.f32 0.0, %v1505
        %v1514 = vmul.f32 %v1506, 1.442695
        %v1515 = vpow.pop %v1514
        %v1516 = vmul.f32 %v1507, 1.442695
        %v1517 = vpow.pop %v1516
        %v1518 = vmul.f32 %v1508, 1.442695
        %v1519 = vpow.pop %v1518
        %v1520 = vmul.f32 %v1509, 1.442695
        %v1521 = vpow.pop %v1520
        %v1522 = vmul.f32 %v1510, 1.442695
        %v1523 = vpow.pop %v1522
        %v1524 = vmul.f32 %v1511, 1.442695
        %v1525 = vpow.pop %v1524
        %v1526 = vmul.f32 %v1512, 1.442695
        %v1527 = vpow.pop %v1526
        %v1528 = vmul.f32 %v1513, 1.442695
        %v1529 = vpow.pop %v1528
        %v1530 = vadd.f32 %v1515, 1.0
        %v1531 = vadd.f32 %v1517, 1.0
        %v1532 = vadd.f32 %v1519, 1.0
        %v1533 = vadd.f32 %v1521, 1.0
        %v1534 = vadd.f32 %v1523, 1.0
        %v1535 = vadd.f32 %v1525, 1.0
        %v1536 = vadd.f32 %v1527, 1.0
        %v1537 = vadd.f32 %v1529, 1.0
        %v1538 = vlog2.pop %v1530
        %v1539 = vmul.f32 %v1538, 0.6931472
        %v1540 = vlog2.pop %v1531
        %v1541 = vmul.f32 %v1540, 0.6931472
        %v1542 = vlog2.pop %v1532
        %v1543 = vmul.f32 %v1542, 0.6931472
        %v1544 = vlog2.pop %v1533
        %v1545 = vmul.f32 %v1544, 0.6931472
        %v1546 = vlog2.pop %v1534
        %v1547 = vmul.f32 %v1546, 0.6931472
        %v1548 = vlog2.pop %v1535
        %v1549 = vmul.f32 %v1548, 0.6931472
        %v1550 = vlog2.pop %v1536
        %v1551 = vmul.f32 %v1550, 0.6931472
        %v1552 = vlog2.pop %v1537
        %v1553 = vmul.f32 %v1552, 0.6931472
        %v1554 = vadd.f32 %v1490, %v1539
        %v1555 = vadd.f32 %v1491, %v1541
        %v1556 = vadd.f32 %v1492, %v1543
        %v1557 = vadd.f32 %v1493, %v1545
        %v1558 = vadd.f32 %v1494, %v1547
        %v1559 = vadd.f32 %v1495, %v1549
        %v1560 = vadd.f32 %v1496, %v1551
        %v1561 = vadd.f32 %v1497, %v1553
        %v1562 = vsub.f32 %v1394, %v1482
        %v1563 = vsub.f32 %v1395, %v1483
        %v1564 = vsub.f32 %v1396, %v1484
        %v1565 = vsub.f32 %v1397, %v1485
        %v1566 = vsub.f32 %v1398, %v1486
        %v1567 = vsub.f32 %v1399, %v1487
        %v1568 = vsub.f32 %v1400, %v1488
        %v1569 = vsub.f32 %v1401, %v1489
        %v1570 = vsub.f32 0.0, %v1554
        %v1571 = vsub.f32 0.0, %v1555
        %v1572 = vsub.f32 0.0, %v1556
        %v1573 = vsub.f32 0.0, %v1557
        %v1574 = vsub.f32 0.0, %v1558
        %v1575 = vsub.f32 0.0, %v1559
        %v1576 = vsub.f32 0.0, %v1560
        %v1577 = vsub.f32 0.0, %v1561
        %v1578 = vmul.f32 %v1562, 1.442695
        %v1579 = vpow.pop %v1578
        %v1580 = vmul.f32 %v1563, 1.442695
        %v1581 = vpow.pop %v1580
        %v1582 = vmul.f32 %v1564, 1.442695
        %v1583 = vpow.pop %v1582
        %v1584 = vmul.f32 %v1565, 1.442695
        %v1585 = vpow.pop %v1584
        %v1586 = vmul.f32 %v1566, 1.442695
        %v1587 = vpow.pop %v1586
        %v1588 = vmul.f32 %v1567, 1.442695
        %v1589 = vpow.pop %v1588
        %v1590 = vmul.f32 %v1568, 1.442695
        %v1591 = vpow.pop %v1590
        %v1592 = vmul.f32 %v1569, 1.442695
        %v1593 = vpow.pop %v1592
        %v1594 = vsub.f32 %v1410, %v1554
        %v1595 = vsub.f32 %v1411, %v1555
        %v1596 = vsub.f32 %v1412, %v1556
        %v1597 = vsub.f32 %v1413, %v1557
        %v1598 = vsub.f32 %v1414, %v1558
        %v1599 = vsub.f32 %v1415, %v1559
        %v1600 = vsub.f32 %v1416, %v1560
        %v1601 = vsub.f32 %v1417, %v1561
        %v1602 = vmul.f32 %v1594, 1.442695
        %v1603 = vpow.pop %v1602
        %v1604 = vmul.f32 %v1595, 1.442695
        %v1605 = vpow.pop %v1604
        %v1606 = vmul.f32 %v1596, 1.442695
        %v1607 = vpow.pop %v1606
        %v1608 = vmul.f32 %v1597, 1.442695
        %v1609 = vpow.pop %v1608
        %v1610 = vmul.f32 %v1598, 1.442695
        %v1611 = vpow.pop %v1610
        %v1612 = vmul.f32 %v1599, 1.442695
        %v1613 = vpow.pop %v1612
        %v1614 = vmul.f32 %v1600, 1.442695
        %v1615 = vpow.pop %v1614
        %v1616 = vmul.f32 %v1601, 1.442695
        %v1617 = vpow.pop %v1616
        %v1618 = vsub.f32 %v1579, %v1603
        %v1619 = vsub.f32 %v1581, %v1605
        %v1620 = vsub.f32 %v1583, %v1607
        %v1621 = vsub.f32 %v1585, %v1609
        %v1622 = vsub.f32 %v1587, %v1611
        %v1623 = vsub.f32 %v1589, %v1613
        %v1624 = vsub.f32 %v1591, %v1615
        %v1625 = vsub.f32 %v1593, %v1617
        %v1626 = vmul.f32 %v1371, %v1354
        %v1627 = vmul.f32 %v1373, %v1355
        %v1628 = vmul.f32 %v1375, %v1356
        %v1629 = vmul.f32 %v1377, %v1357
        %v1630 = vmul.f32 %v1379, %v1358
        %v1631 = vmul.f32 %v1381, %v1359
        %v1632 = vmul.f32 %v1383, %v1360
        %v1633 = vmul.f32 %v1385, %v1361
        %v1634 = vsub.f32 %v1626, %v780
        %v1635 = vsub.f32 %v1627, %v781
        %v1636 = vsub.f32 %v1628, %v782
        %v1637 = vsub.f32 %v1629, %v783
        %v1638 = vsub.f32 %v1630, %v784
        %v1639 = vsub.f32 %v1631, %v785
        %v1640 = vsub.f32 %v1632, %v786
        %v1641 = vsub.f32 %v1633, %v787
        %v1642 = vmax.f32 %v1626, 0.0
        %v1643 = vmax.f32 %v1627, 0.0
        %v1644 = vmax.f32 %v1628, 0.0
        %v1645 = vmax.f32 %v1629, 0.0
        %v1646 = vmax.f32 %v1630, 0.0
        %v1647 = vmax.f32 %v1631, 0.0
        %v1648 = vmax.f32 %v1632, 0.0
        %v1649 = vmax.f32 %v1633, 0.0
        %v1650 = vand.u32 2147483647, %v1626
        %v1651 = vand.u32 2147483647, %v1627
        %v1652 = vand.u32 2147483647, %v1628
        %v1653 = vand.u32 2147483647, %v1629
        %v1654 = vand.u32 2147483647, %v1630
        %v1655 = vand.u32 2147483647, %v1631
        %v1656 = vand.u32 2147483647, %v1632
        %v1657 = vand.u32 2147483647, %v1633
        %v1658 = vsub.f32 0.0, %v1650
        %v1659 = vsub.f32 0.0, %v1651
        %v1660 = vsub.f32 0.0, %v1652
        %v1661 = vsub.f32 0.0, %v1653
        %v1662 = vsub.f32 0.0, %v1654
        %v1663 = vsub.f32 0.0, %v1655
        %v1664 = vsub.f32 0.0, %v1656
        %v1665 = vsub.f32 0.0, %v1657
        %v1666 = vmul.f32 %v1658, 1.442695
        %v1667 = vpow.pop %v1666
        %v1668 = vmul.f32 %v1659, 1.442695
        %v1669 = vpow.pop %v1668
        %v1670 = vmul.f32 %v1660, 1.442695
        %v1671 = vpow.pop %v1670
        %v1672 = vmul.f32 %v1661, 1.442695
        %v1673 = vpow.pop %v1672
        %v1674 = vmul.f32 %v1662, 1.442695
        %v1675 = vpow.pop %v1674
        %v1676 = vmul.f32 %v1663, 1.442695
        %v1677 = vpow.pop %v1676
        %v1678 = vmul.f32 %v1664, 1.442695
        %v1679 = vpow.pop %v1678
        %v1680 = vmul.f32 %v1665, 1.442695
        %v1681 = vpow.pop %v1680
        %v1682 = vadd.f32 %v1667, 1.0
        %v1683 = vadd.f32 %v1669, 1.0
        %v1684 = vadd.f32 %v1671, 1.0
        %v1685 = vadd.f32 %v1673, 1.0
        %v1686 = vadd.f32 %v1675, 1.0
        %v1687 = vadd.f32 %v1677, 1.0
        %v1688 = vadd.f32 %v1679, 1.0
        %v1689 = vadd.f32 %v1681, 1.0
        %v1690 = vlog2.pop %v1682
        %v1691 = vmul.f32 %v1690, 0.6931472
        %v1692 = vlog2.pop %v1683
        %v1693 = vmul.f32 %v1692, 0.6931472
        %v1694 = vlog2.pop %v1684
        %v1695 = vmul.f32 %v1694, 0.6931472
        %v1696 = vlog2.pop %v1685
        %v1697 = vmul.f32 %v1696, 0.6931472
        %v1698 = vlog2.pop %v1686
        %v1699 = vmul.f32 %v1698, 0.6931472
        %v1700 = vlog2.pop %v1687
        %v1701 = vmul.f32 %v1700, 0.6931472
        %v1702 = vlog2.pop %v1688
        %v1703 = vmul.f32 %v1702, 0.6931472
        %v1704 = vlog2.pop %v1689
        %v1705 = vmul.f32 %v1704, 0.6931472
        %v1706 = vadd.f32 %v1642, %v1691
        %v1707 = vadd.f32 %v1643, %v1693
        %v1708 = vadd.f32 %v1644, %v1695
        %v1709 = vadd.f32 %v1645, %v1697
        %v1710 = vadd.f32 %v1646, %v1699
        %v1711 = vadd.f32 %v1647, %v1701
        %v1712 = vadd.f32 %v1648, %v1703
        %v1713 = vadd.f32 %v1649, %v1705
        %v1714 = vmul.f32 %v1706, 2.0
        %v1715 = vmul.f32 %v1707, 2.0
        %v1716 = vmul.f32 %v1708, 2.0
        %v1717 = vmul.f32 %v1709, 2.0
        %v1718 = vmul.f32 %v1710, 2.0
        %v1719 = vmul.f32 %v1711, 2.0
        %v1720 = vmul.f32 %v1712, 2.0
        %v1721 = vmul.f32 %v1713, 2.0
        %v1722 = vsub.f32 %v1634, %v1714
        %v1723 = vsub.f32 %v1635, %v1715
        %v1724 = vsub.f32 %v1636, %v1716
        %v1725 = vsub.f32 %v1637, %v1717
        %v1726 = vsub.f32 %v1638, %v1718
        %v1727 = vsub.f32 %v1639, %v1719
        %v1728 = vsub.f32 %v1640, %v1720
        %v1729 = vsub.f32 %v1641, %v1721
        %vm1730 = vcmp.gt.f32.partialorder %v1618, 1e-05
        %vm1731 = vcmp.gt.f32.partialorder %v1619, 1e-05
        %vm1732 = vcmp.gt.f32.partialorder %v1620, 1e-05
        %vm1733 = vcmp.gt.f32.partialorder %v1621, 1e-05
        %vm1734 = vcmp.gt.f32.partialorder %v1622, 1e-05
        %vm1735 = vcmp.gt.f32.partialorder %v1623, 1e-05
        %vm1736 = vcmp.gt.f32.partialorder %v1624, 1e-05
        %vm1737 = vcmp.gt.f32.partialorder %v1625, 1e-05
        %v1738 = vmax.f32 %v1618, 1e-12
        %v1739 = vmax.f32 %v1619, 1e-12
        %v1740 = vmax.f32 %v1620, 1e-12
        %v1741 = vmax.f32 %v1621, 1e-12
        %v1742 = vmax.f32 %v1622, 1e-12
        %v1743 = vmax.f32 %v1623, 1e-12
        %v1744 = vmax.f32 %v1624, 1e-12
        %v1745 = vmax.f32 %v1625, 1e-12
        %v1746 = vlog2.pop %v1738
        %v1747 = vmul.f32 %v1746, 0.6931472
        %v1748 = vlog2.pop %v1739
        %v1749 = vmul.f32 %v1748, 0.6931472
        %v1750 = vlog2.pop %v1740
        %v1751 = vmul.f32 %v1750, 0.6931472
        %v1752 = vlog2.pop %v1741
        %v1753 = vmul.f32 %v1752, 0.6931472
        %v1754 = vlog2.pop %v1742
        %v1755 = vmul.f32 %v1754, 0.6931472
        %v1756 = vlog2.pop %v1743
        %v1757 = vmul.f32 %v1756, 0.6931472
        %v1758 = vlog2.pop %v1744
        %v1759 = vmul.f32 %v1758, 0.6931472
        %v1760 = vlog2.pop %v1745
        %v1761 = vmul.f32 %v1760, 0.6931472
        %v1762 = vsub.f32 %v1722, 4.8481164
        %v1763 = vsub.f32 %v1723, 4.8481164
        %v1764 = vsub.f32 %v1724, 4.8481164
        %v1765 = vsub.f32 %v1725, 4.8481164
        %v1766 = vsub.f32 %v1726, 4.8481164
        %v1767 = vsub.f32 %v1727, 4.8481164
        %v1768 = vsub.f32 %v1728, 4.8481164
        %v1769 = vsub.f32 %v1729, 4.8481164
        %v1770 = vsel %vm1730, %v1747, %v1762
        %v1771 = vsel %vm1731, %v1749, %v1763
        %v1772 = vsel %vm1732, %v1751, %v1764
        %v1773 = vsel %vm1733, %v1753, %v1765
        %v1774 = vsel %vm1734, %v1755, %v1766
        %v1775 = vsel %vm1735, %v1757, %v1767
        %v1776 = vsel %vm1736, %v1759, %v1768
        %v1777 = vsel %vm1737, %v1761, %v1769
        %vm1778 = vcmp.gt.f32.partialorder %v1286, 0.999
        %vm1779 = vcmp.gt.f32.partialorder %v1287, 0.999
        %vm1780 = vcmp.gt.f32.partialorder %v1350, 0.999
        %vm1781 = vcmp.gt.f32.partialorder %v1351, 0.999
        %vm1782 = vcmp.gt.f32.partialorder %v1352, 0.999
        %vm1783 = vcmp.gt.f32.partialorder %v1353, 0.999
        %vm1784 = vcmp.gt.f32.partialorder %v1348, 0.999
        %vm1785 = vcmp.gt.f32.partialorder %v1349, 0.999
        %v1786 = vsel %vm1778, %v1570, %v1770
        %v1787 = vsel %vm1779, %v1571, %v1771
        %v1788 = vsel %vm1780, %v1572, %v1772
        %v1789 = vsel %vm1781, %v1573, %v1773
        %v1790 = vsel %vm1782, %v1574, %v1774
        %v1791 = vsel %vm1783, %v1575, %v1775
        %v1792 = vsel %vm1784, %v1576, %v1776
        %v1793 = vsel %vm1785, %v1577, %v1777
        %vm1794 = vcmp.lt.f32.partialorder %v1286, -0.999
        %vm1795 = vcmp.lt.f32.partialorder %v1287, -0.999
        %vm1796 = vcmp.lt.f32.partialorder %v1350, -0.999
        %vm1797 = vcmp.lt.f32.partialorder %v1351, -0.999
        %vm1798 = vcmp.lt.f32.partialorder %v1352, -0.999
        %vm1799 = vcmp.lt.f32.partialorder %v1353, -0.999
        %vm1800 = vcmp.lt.f32.partialorder %v1348, -0.999
        %vm1801 = vcmp.lt.f32.partialorder %v1349, -0.999
        %v1802 = vsel %vm1794, %v1562, %v1786
        %v1803 = vsel %vm1795, %v1563, %v1787
        %v1804 = vsel %vm1796, %v1564, %v1788
        %v1805 = vsel %vm1797, %v1565, %v1789
        %v1806 = vsel %vm1798, %v1566, %v1790
        %v1807 = vsel %vm1799, %v1567, %v1791
        %v1808 = vsel %vm1800, %v1568, %v1792
        %v1809 = vsel %vm1801, %v1569, %v1793
        %v1814 = vrot.slane %v1804, 2
        %v1815 = vrot.slane %v1806, 2
        %v1816 = vsel %vm706, %v1814, %v1815
        %v1817 = vrot.slane %v1805, 2
        %v1818 = vrot.slane %v1807, 2
        %v1819 = vsel %vm706, %v1817, %v1818
        %v1824 = vadd.f32 %v1802, %v1816
        %v1825 = vadd.f32 %v1803, %v1819
        %v1826 = vadd.f32 %v1804, %v1815
        %v1827 = vadd.f32 %v1805, %v1818
        %v1830 = vrot.slane %v1806, 4
        %v1831 = vrot.slane %v1808, 4
        %v1832 = vsel %vm559, %v1830, %v1831
        %v1833 = vrot.slane %v1807, 4
        %v1834 = vrot.slane %v1809, 4
        %v1835 = vsel %vm559, %v1833, %v1834
        %v1840 = vadd.f32 %v1824, %v1832
        %v1841 = vadd.f32 %v1825, %v1835
        %v1842 = vadd.f32 %v1826, %v1831
        %v1843 = vadd.f32 %v1827, %v1834
        %v1844 = vsel %vm721, %v585, -inf
        %v1845 = vmax.f32 %v582, %v1844
        %v1846 = vrot.slane %v1845, 4
        %v1847 = vmax.f32 %v1845, %v1846
        %v1848 = vrot.slane %v1847, 2
        %v1849 = vmax.f32 %v1847, %v1848
        %v1850 = vrot.slane %v1849, 1
        %v1851 = vmax.f32 %v1849, %v1850
        %v1852 = vsel %vm721, %v641, -inf
        %v1853 = vmax.f32 %v638, %v1852
        %v1854 = vrot.slane %v1853, 4
        %v1855 = vmax.f32 %v1853, %v1854
        %v1856 = vrot.slane %v1855, 2
        %v1857 = vmax.f32 %v1855, %v1856
        %v1858 = vrot.slane %v1857, 1
        %v1859 = vmax.f32 %v1857, %v1858
        %v1860 = vsub.f32 %v582, %v1851
        %v1861 = vsub.f32 %v638, %v1859
        %v1862 = vsub.f32 %v585, %v1851
        %v1863 = vsub.f32 %v641, %v1859
        %v1864 = vmul.f32 %v1860, 1.442695
        %v1865 = vpow.pop %v1864
        %v1866 = vmul.f32 %v1861, 1.442695
        %v1867 = vpow.pop %v1866
        %v1868 = vmul.f32 %v1862, 1.442695
        %v1869 = vpow.pop %v1868
        %v1870 = vmul.f32 %v1863, 1.442695
        %v1871 = vpow.pop %v1870
        %v1872 = vsel %vm721, %v1869, 0.0
        %v1873 = vadd.f32 %v1865, %v1872
        %v1874 = vrot.slane %v1873, 4
        %v1875 = vadd.f32 %v1873, %v1874
        %v1876 = vrot.slane %v1875, 2
        %v1877 = vadd.f32 %v1875, %v1876
        %v1878 = vrot.slane %v1877, 1
        %v1879 = vadd.f32 %v1877, %v1878
        %v1880 = vsel %vm721, %v1871, 0.0
        %v1881 = vadd.f32 %v1867, %v1880
        %v1882 = vrot.slane %v1881, 4
        %v1883 = vadd.f32 %v1881, %v1882
        %v1884 = vrot.slane %v1883, 2
        %v1885 = vadd.f32 %v1883, %v1884
        %v1886 = vrot.slane %v1885, 1
        %v1887 = vadd.f32 %v1885, %v1886
        %v1888 = vlog2.pop %v1879
        %v1889 = vmul.f32 %v1888, 0.6931472
        %v1890 = vlog2.pop %v1887
        %v1891 = vmul.f32 %v1890, 0.6931472
        %v1892 = vadd.f32 %v1889, %v1851
        %v1893 = vadd.f32 %v1891, %v1859
        %v1894 = vsub.f32 %v582, %v1892
        %v1895 = vsub.f32 %v638, %v1893
        %v1896 = vsub.f32 %v585, %v1892
        %v1897 = vsub.f32 %v641, %v1893
        %v1898 = vadd.f32 %v1840, %v1894
        %v1899 = vadd.f32 %v1841, %v1895
        %v1900 = vadd.f32 %v1842, %v1896
        %v1901 = vadd.f32 %v1843, %v1897
        %v1902 = vsel %vm721, %v1900, -inf
        %v1903 = vmax.f32 %v1898, %v1902
        %v1904 = vrot.slane %v1903, 4
        %v1905 = vmax.f32 %v1903, %v1904
        %v1906 = vrot.slane %v1905, 2
        %v1907 = vmax.f32 %v1905, %v1906
        %v1908 = vrot.slane %v1907, 1
        %v1909 = vmax.f32 %v1907, %v1908
        %v1910 = vsel %vm721, %v1901, -inf
        %v1911 = vmax.f32 %v1899, %v1910
        %v1912 = vrot.slane %v1911, 4
        %v1913 = vmax.f32 %v1911, %v1912
        %v1914 = vrot.slane %v1913, 2
        %v1915 = vmax.f32 %v1913, %v1914
        %v1916 = vrot.slane %v1915, 1
        %v1917 = vmax.f32 %v1915, %v1916
        %v1918 = vsub.f32 %v1898, %v1909
        %v1919 = vsub.f32 %v1899, %v1917
        %v1920 = vsub.f32 %v1900, %v1909
        %v1921 = vsub.f32 %v1901, %v1917
        %v1922 = vmul.f32 %v1918, 1.442695
        %v1923 = vpow.pop %v1922
        %v1924 = vmul.f32 %v1919, 1.442695
        %v1925 = vpow.pop %v1924
        %v1926 = vmul.f32 %v1920, 1.442695
        %v1927 = vpow.pop %v1926
        %v1928 = vmul.f32 %v1921, 1.442695
        %v1929 = vpow.pop %v1928
        %v1930 = vsel %vm721, %v1927, 0.0
        %v1931 = vadd.f32 %v1923, %v1930
        %v1932 = vrot.slane %v1931, 4
        %v1933 = vadd.f32 %v1931, %v1932
        %v1934 = vrot.slane %v1933, 2
        %v1935 = vadd.f32 %v1933, %v1934
        %v1936 = vrot.slane %v1935, 1
        %v1937 = vadd.f32 %v1935, %v1936
        %v1938 = vsel %vm721, %v1929, 0.0
        %v1939 = vadd.f32 %v1925, %v1938
        %v1940 = vrot.slane %v1939, 4
        %v1941 = vadd.f32 %v1939, %v1940
        %v1942 = vrot.slane %v1941, 2
        %v1943 = vadd.f32 %v1941, %v1942
        %v1944 = vrot.slane %v1943, 1
        %v1945 = vadd.f32 %v1943, %v1944
        %v1946 = vlog2.pop %v1937
        %v1947 = vmul.f32 %v1946, 0.6931472
        %v1948 = vlog2.pop %v1945
        %v1949 = vmul.f32 %v1948, 0.6931472
        %v1950 = vadd.f32 %v1947, %v1909
        %v1951 = vadd.f32 %v1949, %v1917
        %v1952 = vsel %vm1011, %v1950, 0.0
        %v1953 = vsel %vm1011, %v1951, 0.0
        %v1954 = vadd.f32 %v1952, %v1953
        %1955 = vadd.xlane.f32.xlu0 %v1954
        %v1956 = vpop.xlane.xlu0 %1955
        %v1957 = vrot.slane %v1956, 4
        %v1958 = vadd.f32 %v1956, %v1957
        %v1959 = vrot.slane %v1958, 2
        %v1960 = vadd.f32 %v1958, %v1959
        %v1961 = vrot.slane %v1960, 1
        %v1962 = vadd.f32 %v1960, %v1961
        %s1963 = vtos %v1962
        %p1964 = scmp.eq.s32.totalorder %s27, 0
        // Predicated region
        $region41: #{tpu_custom_call.1} parent=39 // pred_check
          %p1965 = pneg %p1964
        $region42: #{tpu_custom_call.1} parent=39 // pred_check_branch
          %1967 = sbr.rel (%p1965) target = $region44
        $region43: #{tpu_custom_call.1} parent=39 // pred_region
          %1968 = vst [vmem:[%s372] sm:$0x1] 0.0
        $region44: #{tpu_custom_call.1} parent=39 // pred_fallthru
          _
        %v1969 = vld [vmem:[%s372] sm:$0x1]
        %v1970 = vstv %s1963
        %v1971 = vadd.f32 %v1969, %v1970
        %1972 = vst [vmem:[%s372] sm:$0x1] %v1971
        %s1973 = smul.u32 2, %s27
        %p1974 = scmp.lt.s32.totalorder %s26, 1
        %s1975 = scalar_select %p1974, %s26, 1
        %p1976 = scmp.lt.s32.totalorder %s1973, 1
        %s1977 = scalar_select %p1976, %s1973, 1
        %s1978 = smul.addr %s1975, 26
        %s1979 = sadd.s32 %s1977, %s1978
        %s1980 = smul.addr %s1979, 8
        %s1981 = scalar_lea.vmem %s5, %s1980
        %s1982 = smul.u32 2, %s27
        %p1983 = scmp.lt.s32.totalorder %s26, 1
        %s1984 = scalar_select %p1983, %s26, 1
        %p1985 = scmp.lt.s32.totalorder %s1982, 1
        %s1986 = scalar_select %p1985, %s1982, 1
        %s1987 = smul.addr %s1984, 2
        %s1988 = sadd.s32 %s1986, %s1987
        %s1989 = smul.addr %s1988, 4
        %s1990 = scalar_lea.vmem %s6, %s1989
        %s1991 = sand.u32 %s224, 1
        %s1992 = scalar_lea.sflag [#allocation3], %s1991
        %s1993 = sand.u32 %s224, 1
        %s1994 = scalar_lea.vmem [#allocation2], %s1993
        // Predicated region
        $region45: #{tpu_custom_call.1} parent=39 // pred_check
          %p1995 = pneg %p180
        $region46: #{tpu_custom_call.1} parent=39 // pred_check_branch
          %1997 = sbr.rel (%p1995) target = $region48
        $region47: #{tpu_custom_call.1} parent=39 // pred_region
          %s1998 = smul.u32 2, %s27
        $region48: #{tpu_custom_call.1} parent=39 // pred_fallthru
          _
        // Predicated region
        $region49: #{tpu_custom_call.1} parent=39 // pred_check
          %p1999 = pneg %p208
        $region50: #{tpu_custom_call.1} parent=39 // pred_check_branch
          %2001 = sbr.rel (%p1999) target = $region52
        $region51: #{tpu_custom_call.1} parent=39 // pred_region
          %s2002 = smul.u32 2, %s27
        $region52: #{tpu_custom_call.1} parent=39 // pred_fallthru
          _
        // Predicated region
        $region53: #{tpu_custom_call.1} parent=39 // pred_check
          %p2003 = pneg %p234
        $region54: #{tpu_custom_call.1} parent=39 // pred_check_branch
          %2005 = sbr.rel (%p2003) target = $region56
        $region55: #{tpu_custom_call.1} parent=39 // pred_region
          %2007 = vsyncadd %s1992, 0
          %s2008 = scalar_lea.hbm %s7, %s26
          %s2010 = sshll.u32 %s1994, 4
          %s2011 = int_to_ptr.vmem [resolvable:$true] %s2010
          %s2012 = sshll.u32 %s2008, 4
          %s2013 = int_to_ptr.hbm [resolvable:$true] %s2012
          %2015 = dma.vmem_to_hbm [thread:$0]  %s2011, 16, %s2013, %s1992
        $region56: #{tpu_custom_call.1} parent=39 // pred_fallthru
          _
      $region40: #{tpu_custom_call.1} parent=5 // pred_fallthru
        _
      %p2016 = scmp.le.s32.totalorder 2, %s17
      // Predicated region
      $region57: #{tpu_custom_call.1} parent=5 // pred_check
        %p2017 = pneg %p2016
      $region58: #{tpu_custom_call.1} parent=5 // pred_check_branch
        %2019 = sbr.rel (%p2017) target = $region60
      $region59: #{tpu_custom_call.1} parent=5 // pred_region
        %s2020 = ssub.s32 %s17, 2
        // Predicated region
        $region61: #{tpu_custom_call.1} parent=59 // pred_check
          %p2021 = pneg %p186
        $region62: #{tpu_custom_call.1} parent=59 // pred_check_branch
          %2023 = sbr.rel (%p2021) target = $region64
        $region63: #{tpu_custom_call.1} parent=59 // pred_region
          %s2024 = smul.u32 2, %s29
          %p2025 = scmp.lt.s32.totalorder %s28, 1
          %s2026 = scalar_select %p2025, %s28, 1
          %p2027 = scmp.lt.s32.totalorder %s2024, 1
          %s2028 = scalar_select %p2027, %s2024, 1
          %s2029 = smul.addr %s2026, 26
          %s2030 = sadd.s32 %s2028, %s2029
          %s2031 = smul.addr %s2030, 8
          %s2032 = scalar_lea.vmem %s5, %s2031
        $region64: #{tpu_custom_call.1} parent=59 // pred_fallthru
          _
        // Predicated region
        $region65: #{tpu_custom_call.1} parent=59 // pred_check
          %p2033 = pneg %p214
        $region66: #{tpu_custom_call.1} parent=59 // pred_check_branch
          %2035 = sbr.rel (%p2033) target = $region68
        $region67: #{tpu_custom_call.1} parent=59 // pred_region
          %s2036 = smul.u32 2, %s29
          %p2037 = scmp.lt.s32.totalorder %s28, 1
          %s2038 = scalar_select %p2037, %s28, 1
          %p2039 = scmp.lt.s32.totalorder %s2036, 1
          %s2040 = scalar_select %p2039, %s2036, 1
          %s2041 = smul.addr %s2038, 2
          %s2042 = sadd.s32 %s2040, %s2041
          %s2043 = smul.addr %s2042, 4
          %s2044 = scalar_lea.vmem %s6, %s2043
        $region68: #{tpu_custom_call.1} parent=59 // pred_fallthru
          _
        // Predicated region
        $region69: #{tpu_custom_call.1} parent=59 // pred_check
          %p2045 = pneg %p240
        $region70: #{tpu_custom_call.1} parent=59 // pred_check_branch
          %2047 = sbr.rel (%p2045) target = $region72
        $region71: #{tpu_custom_call.1} parent=59 // pred_region
          %s2048 = sand.u32 %s225, 1
          %s2049 = scalar_lea.sflag [#allocation3], %s2048
          %s2050 = sand.u32 %s225, 1
          %s2051 = scalar_lea.vmem [#allocation2], %s2050
          %2053 = dma.done %s2049, 16
        $region72: #{tpu_custom_call.1} parent=59 // pred_fallthru
          _
      $region60: #{tpu_custom_call.1} parent=5 // pred_fallthru
        _
    $region6: #{tpu_custom_call.1} parent=1 // loop_footer
      %s21 = sadd.s32 1, %s17
    $region7: #{tpu_custom_call.1} parent=1 // loop_footer_branch
      %16 = sbr.rel target = $region3
    $region8: #{tpu_custom_call.1} parent=1 // loop_exit
      _
    %2054 = vsyncpa [#allocation3], 1
    %s2055 = scalar_lea.sflag [#allocation3], 1
    %2056 = vsyncpa %s2055, 1

</llo_original>
